<compile_context>
chip_gen: v6e
topology: v6e:2x2x1
jax: 0.10.0
libtpu: 0.0.40
codegen_flags: <defaults>
</compile_context>

<pallas_src>
import functools

import jax
import jax.numpy as jnp
from jax.experimental import pallas as pl
from jax.experimental.pallas import tpu as pltpu


def _disp_head_kernel(w_ref, b_ref, x_ref, ah_ref, awt_ref, o_ref, s_ref, *,
                      tc, H, W, unroll, do_upsample):
    """One (sample, channel-tile) grid step.

    w_ref   : SMEM (C*9,)       conv weight, flattened (c, ky, kx), f32
    b_ref   : SMEM (1,)         bias, f32
    x_ref   : VMEM (tc, H, W)   channel tile of the input feature map
    ah_ref  : VMEM (H2, H)      bilinear interp matrix (H axis), bf16
    awt_ref : VMEM (W, W2)      bilinear interp matrix (W axis), pre-transposed, bf16
    o_ref   : VMEM (H2, W2)     output (written only on the last channel tile)
    s_ref   : VMEM (3, H, W)    f32 per-kx accumulators, persistent across C tiles
    """
    ct = pl.program_id(1)
    n_ct = pl.num_programs(1)

    # Zero the persistent accumulators at the start of every sample.  Scratch is
    # per-core, and the channel axis is innermost, so this is correct no matter
    # how the "parallel" sample axis is split across TensorCores.
    @pl.when(ct == 0)
    def _():
        s_ref[...] = jnp.zeros_like(s_ref)

    zrow = jnp.zeros((1, W), jnp.float32)

    def channel_body(c, carry):
        s0, s1, s2 = carry
        xc = x_ref[c].astype(jnp.float32)                       # (H, W) - one load
        base = (ct * tc + c) * 9
        w = [w_ref[base + t] for t in range(9)]                 # 9 SMEM reads, hoisted
        # ky-shifted views with zero fill at the H boundary (sublane-only work,
        # hidden under the VALU FMAs).  No lane (kx) movement inside the loop.
        x_dn = jnp.concatenate([zrow, xc[:H - 1, :]], axis=0)   # x[c, h-1, :]
        x_up = jnp.concatenate([xc[1:, :], zrow], axis=0)       # x[c, h+1, :]
        s0 = s0 + x_dn * w[0] + xc * w[3] + x_up * w[6]
        s1 = s1 + x_dn * w[1] + xc * w[4] + x_up * w[7]
        s2 = s2 + x_dn * w[2] + xc * w[5] + x_up * w[8]
        return s0, s1, s2

    carry0 = (s_ref[0], s_ref[1], s_ref[2])
    s0, s1, s2 = jax.lax.fori_loop(0, tc, channel_body, carry0, unroll=unroll)

    # Persist the accumulators for the next channel tile.
    @pl.when(ct < n_ct - 1)
    def _():
        s_ref[0] = s0
        s_ref[1] = s1
        s_ref[2] = s2

    # Finalize on the last channel tile: kx combine + bias + sigmoid + upsample.
    @pl.when(ct == n_ct - 1)
    def _():
        # +-1 lane shift with zero fill as tiny (W, W) off-diagonal matmuls:
        # exact in f32, negligible MXU work, no cross-lane XLU shifts.
        row = jax.lax.broadcasted_iota(jnp.int32, (W, W), 0)
        col = jax.lax.broadcasted_iota(jnp.int32, (W, W), 1)
        sh_r = (col == row + 1).astype(jnp.float32)   # y[:, w] += s0[:, w-1]
        sh_l = (col == row - 1).astype(jnp.float32)   # y[:, w] += s2[:, w+1]
        conv = (s1
                + jnp.dot(s0, sh_r, preferred_element_type=jnp.float32)
                + jnp.dot(s2, sh_l, preferred_element_type=jnp.float32)
                + b_ref[0])
        y = jax.nn.sigmoid(conv)                                   # f32, in vregs
        if do_upsample:
            # Separable bilinear upsample: out = Ah @ y @ Aw^T, bf16 in / f32 acc.
            tmp = jnp.dot(ah_ref[...], y.astype(jnp.bfloat16),
                          preferred_element_type=jnp.float32)      # (H2, W)
            out = jnp.dot(tmp.astype(jnp.bfloat16), awt_ref[...],
                          preferred_element_type=jnp.float32)      # (H2, W2)
            o_ref[...] = out.astype(o_ref.dtype)
        else:
            o_ref[...] = y.astype(o_ref.dtype)


def _interp_matrix(out_size, in_size, scale):
    """1-D bilinear interpolation matrix matching F.interpolate(align_corners=False)."""
    i = jnp.arange(out_size, dtype=jnp.float32)
    src = (i + 0.5) / scale - 0.5
    src = jnp.maximum(src, 0.0)                      # PyTorch clamps negative coords
    i0 = jnp.floor(src).astype(jnp.int32)
    i0 = jnp.minimum(i0, in_size - 1)
    i1 = jnp.minimum(i0 + 1, in_size - 1)
    t = src - i0.astype(jnp.float32)
    m0 = jax.nn.one_hot(i0, in_size, dtype=jnp.float32) * (1.0 - t)[:, None]
    m1 = jax.nn.one_hot(i1, in_size, dtype=jnp.float32) * t[:, None]
    return m0 + m1


def _pick_channel_tile(C, H, W, itemsize, target_bytes=4 << 20):
    """Largest divisor of C whose (tc, H, W) block stays under target_bytes."""
    max_tc = max(1, min(C, target_bytes // max(1, H * W * itemsize)))
    for tc in range(max_tc, 0, -1):
        if C % tc == 0:
            return tc
    return C


def disp_head_forward(x, weight, bias, scale, *, vmem_limit_bytes=32 * 1024 * 1024):
    """x: (N, C, H, W); weight: (1, C, 3, 3); bias: (1,); scale: python int.

    vmem_limit_bytes is an explicit per-generation knob: keep <= ~48 MiB on v7x
    (64 MiB physical), 32-64 MiB is fine on v5e/v6e (128 MiB physical).
    """
    N, C, H, W = x.shape
    scale = int(scale)
    H2, W2 = H * scale, W * scale
    do_upsample = scale > 1

    if do_upsample:
        ah = _interp_matrix(H2, H, float(scale)).astype(jnp.bfloat16)      # (H2, H)
        awt = _interp_matrix(W2, W, float(scale)).T.astype(jnp.bfloat16)   # (W, W2)
    else:
        ah = jnp.eye(H, dtype=jnp.bfloat16)
        awt = jnp.eye(W, dtype=jnp.bfloat16)

    w_flat = weight.reshape(-1).astype(jnp.float32)   # (C*9,) in (c, ky, kx) order
    b = bias.astype(jnp.float32)

    tc = _pick_channel_tile(C, H, W, x.dtype.itemsize)
    nct = C // tc
    unroll = tc if tc <= 8 else max(u for u in (1, 2, 4, 8) if tc % u == 0)

    flops = N * 18 * C * H * W
    if do_upsample:
        flops += N * (2 * H2 * H * W + 2 * H2 * W * W2)
    cost = pl.CostEstimate(
        flops=flops,
        transcendentals=N * H * W,
        bytes_accessed=(x.size * x.dtype.itemsize
                        + N * H2 * W2 * x.dtype.itemsize
                        + w_flat.size * 4 + b.size * 4
                        + ah.size * 2 + awt.size * 2),
    )

    out = pl.pallas_call(
        functools.partial(_disp_head_kernel, tc=tc, H=H, W=W,
                          unroll=unroll, do_upsample=do_upsample),
        out_shape=jax.ShapeDtypeStruct((N, H2, W2), x.dtype),
        grid=(N, nct),
        in_specs=[
            pl.BlockSpec(memory_space=pltpu.SMEM),                                # conv weight
            pl.BlockSpec(memory_space=pltpu.SMEM),                                # bias
            pl.BlockSpec((pl.Squeezed(), tc, H, W), lambda n, ct: (n, ct, 0, 0)), # x tile
            pl.BlockSpec((H2, H), lambda n, ct: (0, 0)),                          # Ah
            pl.BlockSpec((W, W2), lambda n, ct: (0, 0)),                          # Aw^T
        ],
        out_specs=pl.BlockSpec((pl.Squeezed(), H2, W2), lambda n, ct: (n, 0, 0)),
        scratch_shapes=[pltpu.VMEM((3, H, W), jnp.float32)],
        compiler_params=pltpu.CompilerParams(
            dimension_semantics=("parallel", "arbitrary"),
            vmem_limit_bytes=vmem_limit_bytes,
        ),
        cost_estimate=cost,
    )(w_flat, b, x, ah, awt)

    return out.reshape(N, 1, H2, W2)


if __name__ == "__main__":
    N, C, H, W = 2, 4, 16, 16
    scale = 2

    key = jax.random.PRNGKey(0)
    kx_, kw_, kb_ = jax.random.split(key, 3)
    x = jax.random.normal(kx_, (N, C, H, W), dtype=jnp.float32)
    # Deterministic synthetic parameters (same shapes as nn.Conv2d(C, 1, 3, padding=1)).
    weight = jax.random.normal(kw_, (1, C, 3, 3), dtype=jnp.float32) * 0.1
    bias = jax.random.normal(kb_, (1,), dtype=jnp.float32) * 0.1

    out = disp_head_forward(x, weight, bias, scale)
    out = jax.block_until_ready(out)

    # Pure-JAX f32 reference.
    ref = jax.lax.conv_general_dilated(
        x, weight, window_strides=(1, 1), padding=((1, 1), (1, 1)),
        dimension_numbers=("NCHW", "OIHW", "NCHW"))
    ref = jax.nn.sigmoid(ref + bias.reshape(1, 1, 1, 1))
    if scale > 1:
        ah_f32 = _interp_matrix(H * scale, H, float(scale))
        aw_f32 = _interp_matrix(W * scale, W, float(scale))
        ref = jnp.einsum("ph,nchw,qw->ncpq", ah_f32, ref, aw_f32)

    assert out.shape == (N, 1, H * scale, W * scale), out.shape
    # The upsample matmuls use bf16 inputs (f32 accumulation), so tolerance is
    # looser than pure f32.
    err = float(jnp.max(jnp.abs(out - ref)))
    assert jnp.allclose(out, ref, atol=2e-2, rtol=2e-2), f"mismatch vs reference: {err}"
    print("KERNEL_OK")
</pallas_src>

<mosaic_0001>
module attributes {stable_mosaic.version = 11 : i64} {
  func.func @_disp_head_kernel(%arg0: i32, %arg1: i32, %arg2: memref<36xf32, #tpu.memory_space<smem>>, %arg3: memref<1xf32, #tpu.memory_space<smem>>, %arg4: memref<1x4x16x16xf32, #tpu.memory_space<vmem>>, %arg5: memref<32x16xbf16, #tpu.memory_space<vmem>>, %arg6: memref<16x32xbf16, #tpu.memory_space<vmem>>, %arg7: memref<1x32x32xf32, #tpu.memory_space<vmem>>, %arg8: memref<3x16x16xf32, #tpu.memory_space<vmem>>) attributes {dimension_semantics = [#tpu.dimension_semantics<parallel>, #tpu.dimension_semantics<arbitrary>], iteration_bounds = array<i64: 2, 1>, scalar_prefetch = 0 : i64, scratch_operands = 1 : i64, tpu.core_type = #tpu.core_type<tc>, window_params = [{transform_indices = @transform_0, window_bounds = array<i64: 36>}, {transform_indices = @transform_1, window_bounds = array<i64: 1>}, {transform_indices = @transform_2, window_bounds = array<i64: 1, 4, 16, 16>}, {pipeline_mode = #tpu.pipeline_mode<synchronous>, transform_indices = @transform_3, window_bounds = array<i64: 32, 16>}, {pipeline_mode = #tpu.pipeline_mode<synchronous>, transform_indices = @transform_4, window_bounds = array<i64: 16, 32>}, {transform_indices = @transform_5, window_bounds = array<i64: 1, 32, 32>}]} {
    %c0_i32 = arith.constant 0 : i32
    %0 = arith.cmpi eq, %arg1, %c0_i32 : i32
    %1 = arith.extui %0 : i1 to i32
    %c0_i32_0 = arith.constant 0 : i32
    %2 = arith.cmpi ne, %1, %c0_i32_0 : i32
    scf.if %2 {
      %cst_63 = arith.constant 0.000000e+00 : f32
      %272 = vector.broadcast %cst_63 : f32 to vector<3x16x16xf32>
      %c0_64 = arith.constant 0 : index
      %c0_65 = arith.constant 0 : index
      %c0_66 = arith.constant 0 : index
      %273 = vector.load %arg8[%c0_64, %c0_65, %c0_66] : memref<3x16x16xf32, #tpu.memory_space<vmem>>, vector<3x16x16xf32>
      tpu.vector_store %arg8[%c0_64, %c0_65, %c0_66], %272 {strides = array<i32>} : memref<3x16x16xf32, #tpu.memory_space<vmem>>, vector<3x16x16xf32>,
    } else {
    }
    %cst = arith.constant 0.000000e+00 : f32
    %3 = vector.broadcast %cst : f32 to vector<1x16xf32>
    %c0 = arith.constant 0 : index
    %c0_1 = arith.constant 0 : index
    %c0_2 = arith.constant 0 : index
    %4 = vector.load %arg8[%c0, %c0_1, %c0_2] : memref<3x16x16xf32, #tpu.memory_space<vmem>>, vector<1x16x16xf32>
    %5 = vector.shape_cast %4 : vector<1x16x16xf32> to vector<16x16xf32>
    %c1 = arith.constant 1 : index
    %c0_3 = arith.constant 0 : index
    %c0_4 = arith.constant 0 : index
    %6 = vector.load %arg8[%c1, %c0_3, %c0_4] : memref<3x16x16xf32, #tpu.memory_space<vmem>>, vector<1x16x16xf32>
    %7 = vector.shape_cast %6 : vector<1x16x16xf32> to vector<16x16xf32>
    %c2 = arith.constant 2 : index
    %c0_5 = arith.constant 0 : index
    %c0_6 = arith.constant 0 : index
    %8 = vector.load %arg8[%c2, %c0_5, %c0_6] : memref<3x16x16xf32, #tpu.memory_space<vmem>>, vector<1x16x16xf32>
    %9 = vector.shape_cast %8 : vector<1x16x16xf32> to vector<16x16xf32>
    %c0_i32_7 = arith.constant 0 : i32
    %c0_8 = arith.constant 0 : index
    %10 = arith.index_cast %c0_i32_7 : i32 to index
    %c0_9 = arith.constant 0 : index
    %c0_10 = arith.constant 0 : index
    %11 = vector.load %arg4[%c0_8, %10, %c0_9, %c0_10] : memref<1x4x16x16xf32, #tpu.memory_space<vmem>>, vector<1x1x16x16xf32>
    %12 = vector.shape_cast %11 : vector<1x1x16x16xf32> to vector<16x16xf32>
    %c4_i32 = arith.constant 4 : i32
    %13 = arith.muli %arg1, %c4_i32 : i32
    %14 = arith.addi %13, %c0_i32_7 : i32
    %c9_i32 = arith.constant 9 : i32
    %15 = arith.muli %14, %c9_i32 : i32
    %c0_i32_11 = arith.constant 0 : i32
    %16 = arith.addi %15, %c0_i32_11 : i32
    %17 = arith.index_cast %16 : i32 to index
    %18 = memref.load %arg2[%17] : memref<36xf32, #tpu.memory_space<smem>>
    %c1_i32 = arith.constant 1 : i32
    %19 = arith.addi %15, %c1_i32 : i32
    %20 = arith.index_cast %19 : i32 to index
    %21 = memref.load %arg2[%20] : memref<36xf32, #tpu.memory_space<smem>>
    %c2_i32 = arith.constant 2 : i32
    %22 = arith.addi %15, %c2_i32 : i32
    %23 = arith.index_cast %22 : i32 to index
    %24 = memref.load %arg2[%23] : memref<36xf32, #tpu.memory_space<smem>>
    %c3_i32 = arith.constant 3 : i32
    %25 = arith.addi %15, %c3_i32 : i32
    %26 = arith.index_cast %25 : i32 to index
    %27 = memref.load %arg2[%26] : memref<36xf32, #tpu.memory_space<smem>>
    %c4_i32_12 = arith.constant 4 : i32
    %28 = arith.addi %15, %c4_i32_12 : i32
    %29 = arith.index_cast %28 : i32 to index
    %30 = memref.load %arg2[%29] : memref<36xf32, #tpu.memory_space<smem>>
    %c5_i32 = arith.constant 5 : i32
    %31 = arith.addi %15, %c5_i32 : i32
    %32 = arith.index_cast %31 : i32 to index
    %33 = memref.load %arg2[%32] : memref<36xf32, #tpu.memory_space<smem>>
    %c6_i32 = arith.constant 6 : i32
    %34 = arith.addi %15, %c6_i32 : i32
    %35 = arith.index_cast %34 : i32 to index
    %36 = memref.load %arg2[%35] : memref<36xf32, #tpu.memory_space<smem>>
    %c7_i32 = arith.constant 7 : i32
    %37 = arith.addi %15, %c7_i32 : i32
    %38 = arith.index_cast %37 : i32 to index
    %39 = memref.load %arg2[%38] : memref<36xf32, #tpu.memory_space<smem>>
    %c8_i32 = arith.constant 8 : i32
    %40 = arith.addi %15, %c8_i32 : i32
    %41 = arith.index_cast %40 : i32 to index
    %42 = memref.load %arg2[%41] : memref<36xf32, #tpu.memory_space<smem>>
    %43 = vector.extract_strided_slice %12 {offsets = [0, 0], sizes = [15, 16], strides = [1, 1]} : vector<16x16xf32> to vector<15x16xf32>
    %44 = tpu.concatenate %3, %43 in 0 : vector<1x16xf32>, vector<15x16xf32> -> vector<16x16xf32>
    %45 = vector.extract_strided_slice %12 {offsets = [1, 0], sizes = [15, 16], strides = [1, 1]} : vector<16x16xf32> to vector<15x16xf32>
    %46 = tpu.concatenate %45, %3 in 0 : vector<15x16xf32>, vector<1x16xf32> -> vector<16x16xf32>
    %47 = vector.broadcast %18 : f32 to vector<16x16xf32>
    %48 = arith.mulf %44, %47 : vector<16x16xf32>
    %49 = arith.addf %5, %48 : vector<16x16xf32>
    %50 = vector.broadcast %27 : f32 to vector<16x16xf32>
    %51 = arith.mulf %12, %50 : vector<16x16xf32>
    %52 = arith.addf %49, %51 : vector<16x16xf32>
    %53 = vector.broadcast %36 : f32 to vector<16x16xf32>
    %54 = arith.mulf %46, %53 : vector<16x16xf32>
    %55 = arith.addf %52, %54 : vector<16x16xf32>
    %56 = vector.broadcast %21 : f32 to vector<16x16xf32>
    %57 = arith.mulf %44, %56 : vector<16x16xf32>
    %58 = arith.addf %7, %57 : vector<16x16xf32>
    %59 = vector.broadcast %30 : f32 to vector<16x16xf32>
    %60 = arith.mulf %12, %59 : vector<16x16xf32>
    %61 = arith.addf %58, %60 : vector<16x16xf32>
    %62 = vector.broadcast %39 : f32 to vector<16x16xf32>
    %63 = arith.mulf %46, %62 : vector<16x16xf32>
    %64 = arith.addf %61, %63 : vector<16x16xf32>
    %65 = vector.broadcast %24 : f32 to vector<16x16xf32>
    %66 = arith.mulf %44, %65 : vector<16x16xf32>
    %67 = arith.addf %9, %66 : vector<16x16xf32>
    %68 = vector.broadcast %33 : f32 to vector<16x16xf32>
    %69 = arith.mulf %12, %68 : vector<16x16xf32>
    %70 = arith.addf %67, %69 : vector<16x16xf32>
    %71 = vector.broadcast %42 : f32 to vector<16x16xf32>
    %72 = arith.mulf %46, %71 : vector<16x16xf32>
    %73 = arith.addf %70, %72 : vector<16x16xf32>
    %c1_i32_13 = arith.constant 1 : i32
    %c0_14 = arith.constant 0 : index
    %74 = arith.index_cast %c1_i32_13 : i32 to index
    %c0_15 = arith.constant 0 : index
    %c0_16 = arith.constant 0 : index
    %75 = vector.load %arg4[%c0_14, %74, %c0_15, %c0_16] : memref<1x4x16x16xf32, #tpu.memory_space<vmem>>, vector<1x1x16x16xf32>
    %76 = vector.shape_cast %75 : vector<1x1x16x16xf32> to vector<16x16xf32>
    %c4_i32_17 = arith.constant 4 : i32
    %77 = arith.muli %arg1, %c4_i32_17 : i32
    %78 = arith.addi %77, %c1_i32_13 : i32
    %c9_i32_18 = arith.constant 9 : i32
    %79 = arith.muli %78, %c9_i32_18 : i32
    %c0_i32_19 = arith.constant 0 : i32
    %80 = arith.addi %79, %c0_i32_19 : i32
    %81 = arith.index_cast %80 : i32 to index
    %82 = memref.load %arg2[%81] : memref<36xf32, #tpu.memory_space<smem>>
    %c1_i32_20 = arith.constant 1 : i32
    %83 = arith.addi %79, %c1_i32_20 : i32
    %84 = arith.index_cast %83 : i32 to index
    %85 = memref.load %arg2[%84] : memref<36xf32, #tpu.memory_space<smem>>
    %c2_i32_21 = arith.constant 2 : i32
    %86 = arith.addi %79, %c2_i32_21 : i32
    %87 = arith.index_cast %86 : i32 to index
    %88 = memref.load %arg2[%87] : memref<36xf32, #tpu.memory_space<smem>>
    %c3_i32_22 = arith.constant 3 : i32
    %89 = arith.addi %79, %c3_i32_22 : i32
    %90 = arith.index_cast %89 : i32 to index
    %91 = memref.load %arg2[%90] : memref<36xf32, #tpu.memory_space<smem>>
    %c4_i32_23 = arith.constant 4 : i32
    %92 = arith.addi %79, %c4_i32_23 : i32
    %93 = arith.index_cast %92 : i32 to index
    %94 = memref.load %arg2[%93] : memref<36xf32, #tpu.memory_space<smem>>
    %c5_i32_24 = arith.constant 5 : i32
    %95 = arith.addi %79, %c5_i32_24 : i32
    %96 = arith.index_cast %95 : i32 to index
    %97 = memref.load %arg2[%96] : memref<36xf32, #tpu.memory_space<smem>>
    %c6_i32_25 = arith.constant 6 : i32
    %98 = arith.addi %79, %c6_i32_25 : i32
    %99 = arith.index_cast %98 : i32 to index
    %100 = memref.load %arg2[%99] : memref<36xf32, #tpu.memory_space<smem>>
    %c7_i32_26 = arith.constant 7 : i32
    %101 = arith.addi %79, %c7_i32_26 : i32
    %102 = arith.index_cast %101 : i32 to index
    %103 = memref.load %arg2[%102] : memref<36xf32, #tpu.memory_space<smem>>
    %c8_i32_27 = arith.constant 8 : i32
    %104 = arith.addi %79, %c8_i32_27 : i32
    %105 = arith.index_cast %104 : i32 to index
    %106 = memref.load %arg2[%105] : memref<36xf32, #tpu.memory_space<smem>>
    %107 = vector.extract_strided_slice %76 {offsets = [0, 0], sizes = [15, 16], strides = [1, 1]} : vector<16x16xf32> to vector<15x16xf32>
    %108 = tpu.concatenate %3, %107 in 0 : vector<1x16xf32>, vector<15x16xf32> -> vector<16x16xf32>
    %109 = vector.extract_strided_slice %76 {offsets = [1, 0], sizes = [15, 16], strides = [1, 1]} : vector<16x16xf32> to vector<15x16xf32>
    %110 = tpu.concatenate %109, %3 in 0 : vector<15x16xf32>, vector<1x16xf32> -> vector<16x16xf32>
    %111 = vector.broadcast %82 : f32 to vector<16x16xf32>
    %112 = arith.mulf %108, %111 : vector<16x16xf32>
    %113 = arith.addf %55, %112 : vector<16x16xf32>
    %114 = vector.broadcast %91 : f32 to vector<16x16xf32>
    %115 = arith.mulf %76, %114 : vector<16x16xf32>
    %116 = arith.addf %113, %115 : vector<16x16xf32>
    %117 = vector.broadcast %100 : f32 to vector<16x16xf32>
    %118 = arith.mulf %110, %117 : vector<16x16xf32>
    %119 = arith.addf %116, %118 : vector<16x16xf32>
    %120 = vector.broadcast %85 : f32 to vector<16x16xf32>
    %121 = arith.mulf %108, %120 : vector<16x16xf32>
    %122 = arith.addf %64, %121 : vector<16x16xf32>
    %123 = vector.broadcast %94 : f32 to vector<16x16xf32>
    %124 = arith.mulf %76, %123 : vector<16x16xf32>
    %125 = arith.addf %122, %124 : vector<16x16xf32>
    %126 = vector.broadcast %103 : f32 to vector<16x16xf32>
    %127 = arith.mulf %110, %126 : vector<16x16xf32>
    %128 = arith.addf %125, %127 : vector<16x16xf32>
    %129 = vector.broadcast %88 : f32 to vector<16x16xf32>
    %130 = arith.mulf %108, %129 : vector<16x16xf32>
    %131 = arith.addf %73, %130 : vector<16x16xf32>
    %132 = vector.broadcast %97 : f32 to vector<16x16xf32>
    %133 = arith.mulf %76, %132 : vector<16x16xf32>
    %134 = arith.addf %131, %133 : vector<16x16xf32>
    %135 = vector.broadcast %106 : f32 to vector<16x16xf32>
    %136 = arith.mulf %110, %135 : vector<16x16xf32>
    %137 = arith.addf %134, %136 : vector<16x16xf32>
    %c2_i32_28 = arith.constant 2 : i32
    %c0_29 = arith.constant 0 : index
    %138 = arith.index_cast %c2_i32_28 : i32 to index
    %c0_30 = arith.constant 0 : index
    %c0_31 = arith.constant 0 : index
    %139 = vector.load %arg4[%c0_29, %138, %c0_30, %c0_31] : memref<1x4x16x16xf32, #tpu.memory_space<vmem>>, vector<1x1x16x16xf32>
    %140 = vector.shape_cast %139 : vector<1x1x16x16xf32> to vector<16x16xf32>
    %c4_i32_32 = arith.constant 4 : i32
    %141 = arith.muli %arg1, %c4_i32_32 : i32
    %142 = arith.addi %141, %c2_i32_28 : i32
    %c9_i32_33 = arith.constant 9 : i32
    %143 = arith.muli %142, %c9_i32_33 : i32
    %c0_i32_34 = arith.constant 0 : i32
    %144 = arith.addi %143, %c0_i32_34 : i32
    %145 = arith.index_cast %144 : i32 to index
    %146 = memref.load %arg2[%145] : memref<36xf32, #tpu.memory_space<smem>>
    %c1_i32_35 = arith.constant 1 : i32
    %147 = arith.addi %143, %c1_i32_35 : i32
    %148 = arith.index_cast %147 : i32 to index
    %149 = memref.load %arg2[%148] : memref<36xf32, #tpu.memory_space<smem>>
    %c2_i32_36 = arith.constant 2 : i32
    %150 = arith.addi %143, %c2_i32_36 : i32
    %151 = arith.index_cast %150 : i32 to index
    %152 = memref.load %arg2[%151] : memref<36xf32, #tpu.memory_space<smem>>
    %c3_i32_37 = arith.constant 3 : i32
    %153 = arith.addi %143, %c3_i32_37 : i32
    %154 = arith.index_cast %153 : i32 to index
    %155 = memref.load %arg2[%154] : memref<36xf32, #tpu.memory_space<smem>>
    %c4_i32_38 = arith.constant 4 : i32
    %156 = arith.addi %143, %c4_i32_38 : i32
    %157 = arith.index_cast %156 : i32 to index
    %158 = memref.load %arg2[%157] : memref<36xf32, #tpu.memory_space<smem>>
    %c5_i32_39 = arith.constant 5 : i32
    %159 = arith.addi %143, %c5_i32_39 : i32
    %160 = arith.index_cast %159 : i32 to index
    %161 = memref.load %arg2[%160] : memref<36xf32, #tpu.memory_space<smem>>
    %c6_i32_40 = arith.constant 6 : i32
    %162 = arith.addi %143, %c6_i32_40 : i32
    %163 = arith.index_cast %162 : i32 to index
    %164 = memref.load %arg2[%163] : memref<36xf32, #tpu.memory_space<smem>>
    %c7_i32_41 = arith.constant 7 : i32
    %165 = arith.addi %143, %c7_i32_41 : i32
    %166 = arith.index_cast %165 : i32 to index
    %167 = memref.load %arg2[%166] : memref<36xf32, #tpu.memory_space<smem>>
    %c8_i32_42 = arith.constant 8 : i32
    %168 = arith.addi %143, %c8_i32_42 : i32
    %169 = arith.index_cast %168 : i32 to index
    %170 = memref.load %arg2[%169] : memref<36xf32, #tpu.memory_space<smem>>
    %171 = vector.extract_strided_slice %140 {offsets = [0, 0], sizes = [15, 16], strides = [1, 1]} : vector<16x16xf32> to vector<15x16xf32>
    %172 = tpu.concatenate %3, %171 in 0 : vector<1x16xf32>, vector<15x16xf32> -> vector<16x16xf32>
    %173 = vector.extract_strided_slice %140 {offsets = [1, 0], sizes = [15, 16], strides = [1, 1]} : vector<16x16xf32> to vector<15x16xf32>
    %174 = tpu.concatenate %173, %3 in 0 : vector<15x16xf32>, vector<1x16xf32> -> vector<16x16xf32>
    %175 = vector.broadcast %146 : f32 to vector<16x16xf32>
    %176 = arith.mulf %172, %175 : vector<16x16xf32>
    %177 = arith.addf %119, %176 : vector<16x16xf32>
    %178 = vector.broadcast %155 : f32 to vector<16x16xf32>
    %179 = arith.mulf %140, %178 : vector<16x16xf32>
    %180 = arith.addf %177, %179 : vector<16x16xf32>
    %181 = vector.broadcast %164 : f32 to vector<16x16xf32>
    %182 = arith.mulf %174, %181 : vector<16x16xf32>
    %183 = arith.addf %180, %182 : vector<16x16xf32>
    %184 = vector.broadcast %149 : f32 to vector<16x16xf32>
    %185 = arith.mulf %172, %184 : vector<16x16xf32>
    %186 = arith.addf %128, %185 : vector<16x16xf32>
    %187 = vector.broadcast %158 : f32 to vector<16x16xf32>
    %188 = arith.mulf %140, %187 : vector<16x16xf32>
    %189 = arith.addf %186, %188 : vector<16x16xf32>
    %190 = vector.broadcast %167 : f32 to vector<16x16xf32>
    %191 = arith.mulf %174, %190 : vector<16x16xf32>
    %192 = arith.addf %189, %191 : vector<16x16xf32>
    %193 = vector.broadcast %152 : f32 to vector<16x16xf32>
    %194 = arith.mulf %172, %193 : vector<16x16xf32>
    %195 = arith.addf %137, %194 : vector<16x16xf32>
    %196 = vector.broadcast %161 : f32 to vector<16x16xf32>
    %197 = arith.mulf %140, %196 : vector<16x16xf32>
    %198 = arith.addf %195, %197 : vector<16x16xf32>
    %199 = vector.broadcast %170 : f32 to vector<16x16xf32>
    %200 = arith.mulf %174, %199 : vector<16x16xf32>
    %201 = arith.addf %198, %200 : vector<16x16xf32>
    %c3_i32_43 = arith.constant 3 : i32
    %c0_44 = arith.constant 0 : index
    %202 = arith.index_cast %c3_i32_43 : i32 to index
    %c0_45 = arith.constant 0 : index
    %c0_46 = arith.constant 0 : index
    %203 = vector.load %arg4[%c0_44, %202, %c0_45, %c0_46] : memref<1x4x16x16xf32, #tpu.memory_space<vmem>>, vector<1x1x16x16xf32>
    %204 = vector.shape_cast %203 : vector<1x1x16x16xf32> to vector<16x16xf32>
    %c4_i32_47 = arith.constant 4 : i32
    %205 = arith.muli %arg1, %c4_i32_47 : i32
    %206 = arith.addi %205, %c3_i32_43 : i32
    %c9_i32_48 = arith.constant 9 : i32
    %207 = arith.muli %206, %c9_i32_48 : i32
    %c0_i32_49 = arith.constant 0 : i32
    %208 = arith.addi %207, %c0_i32_49 : i32
    %209 = arith.index_cast %208 : i32 to index
    %210 = memref.load %arg2[%209] : memref<36xf32, #tpu.memory_space<smem>>
    %c1_i32_50 = arith.constant 1 : i32
    %211 = arith.addi %207, %c1_i32_50 : i32
    %212 = arith.index_cast %211 : i32 to index
    %213 = memref.load %arg2[%212] : memref<36xf32, #tpu.memory_space<smem>>
    %c2_i32_51 = arith.constant 2 : i32
    %214 = arith.addi %207, %c2_i32_51 : i32
    %215 = arith.index_cast %214 : i32 to index
    %216 = memref.load %arg2[%215] : memref<36xf32, #tpu.memory_space<smem>>
    %c3_i32_52 = arith.constant 3 : i32
    %217 = arith.addi %207, %c3_i32_52 : i32
    %218 = arith.index_cast %217 : i32 to index
    %219 = memref.load %arg2[%218] : memref<36xf32, #tpu.memory_space<smem>>
    %c4_i32_53 = arith.constant 4 : i32
    %220 = arith.addi %207, %c4_i32_53 : i32
    %221 = arith.index_cast %220 : i32 to index
    %222 = memref.load %arg2[%221] : memref<36xf32, #tpu.memory_space<smem>>
    %c5_i32_54 = arith.constant 5 : i32
    %223 = arith.addi %207, %c5_i32_54 : i32
    %224 = arith.index_cast %223 : i32 to index
    %225 = memref.load %arg2[%224] : memref<36xf32, #tpu.memory_space<smem>>
    %c6_i32_55 = arith.constant 6 : i32
    %226 = arith.addi %207, %c6_i32_55 : i32
    %227 = arith.index_cast %226 : i32 to index
    %228 = memref.load %arg2[%227] : memref<36xf32, #tpu.memory_space<smem>>
    %c7_i32_56 = arith.constant 7 : i32
    %229 = arith.addi %207, %c7_i32_56 : i32
    %230 = arith.index_cast %229 : i32 to index
    %231 = memref.load %arg2[%230] : memref<36xf32, #tpu.memory_space<smem>>
    %c8_i32_57 = arith.constant 8 : i32
    %232 = arith.addi %207, %c8_i32_57 : i32
    %233 = arith.index_cast %232 : i32 to index
    %234 = memref.load %arg2[%233] : memref<36xf32, #tpu.memory_space<smem>>
    %235 = vector.extract_strided_slice %204 {offsets = [0, 0], sizes = [15, 16], strides = [1, 1]} : vector<16x16xf32> to vector<15x16xf32>
    %236 = tpu.concatenate %3, %235 in 0 : vector<1x16xf32>, vector<15x16xf32> -> vector<16x16xf32>
    %237 = vector.extract_strided_slice %204 {offsets = [1, 0], sizes = [15, 16], strides = [1, 1]} : vector<16x16xf32> to vector<15x16xf32>
    %238 = tpu.concatenate %237, %3 in 0 : vector<15x16xf32>, vector<1x16xf32> -> vector<16x16xf32>
    %239 = vector.broadcast %210 : f32 to vector<16x16xf32>
    %240 = arith.mulf %236, %239 : vector<16x16xf32>
    %241 = arith.addf %183, %240 : vector<16x16xf32>
    %242 = vector.broadcast %219 : f32 to vector<16x16xf32>
    %243 = arith.mulf %204, %242 : vector<16x16xf32>
    %244 = arith.addf %241, %243 : vector<16x16xf32>
    %245 = vector.broadcast %228 : f32 to vector<16x16xf32>
    %246 = arith.mulf %238, %245 : vector<16x16xf32>
    %247 = arith.addf %244, %246 : vector<16x16xf32>
    %248 = vector.broadcast %213 : f32 to vector<16x16xf32>
    %249 = arith.mulf %236, %248 : vector<16x16xf32>
    %250 = arith.addf %192, %249 : vector<16x16xf32>
    %251 = vector.broadcast %222 : f32 to vector<16x16xf32>
    %252 = arith.mulf %204, %251 : vector<16x16xf32>
    %253 = arith.addf %250, %252 : vector<16x16xf32>
    %254 = vector.broadcast %231 : f32 to vector<16x16xf32>
    %255 = arith.mulf %238, %254 : vector<16x16xf32>
    %256 = arith.addf %253, %255 : vector<16x16xf32>
    %257 = vector.broadcast %216 : f32 to vector<16x16xf32>
    %258 = arith.mulf %236, %257 : vector<16x16xf32>
    %259 = arith.addf %201, %258 : vector<16x16xf32>
    %260 = vector.broadcast %225 : f32 to vector<16x16xf32>
    %261 = arith.mulf %204, %260 : vector<16x16xf32>
    %262 = arith.addf %259, %261 : vector<16x16xf32>
    %263 = vector.broadcast %234 : f32 to vector<16x16xf32>
    %264 = arith.mulf %238, %263 : vector<16x16xf32>
    %265 = arith.addf %262, %264 : vector<16x16xf32>
    %c4_i32_58 = arith.constant 4 : i32
    %c0_i32_59 = arith.constant 0 : i32
    %266 = arith.cmpi slt, %arg1, %c0_i32_59 : i32
    %267 = arith.extui %266 : i1 to i32
    %c0_i32_60 = arith.constant 0 : i32
    %268 = arith.cmpi ne, %267, %c0_i32_60 : i32
    scf.if %268 {
      %c0_63 = arith.constant 0 : index
      %c0_64 = arith.constant 0 : index
      %c0_65 = arith.constant 0 : index
      %272 = vector.load %arg8[%c0_63, %c0_64, %c0_65] : memref<3x16x16xf32, #tpu.memory_space<vmem>>, vector<1x16x16xf32>
      %273 = vector.shape_cast %272 : vector<1x16x16xf32> to vector<16x16xf32>
      %274 = vector.shape_cast %247 : vector<16x16xf32> to vector<1x16x16xf32>
      tpu.vector_store %arg8[%c0_63, %c0_64, %c0_65], %274 {strides = array<i32>} : memref<3x16x16xf32, #tpu.memory_space<vmem>>, vector<1x16x16xf32>,
      %c1_66 = arith.constant 1 : index
      %c0_67 = arith.constant 0 : index
      %c0_68 = arith.constant 0 : index
      %275 = vector.load %arg8[%c1_66, %c0_67, %c0_68] : memref<3x16x16xf32, #tpu.memory_space<vmem>>, vector<1x16x16xf32>
      %276 = vector.shape_cast %275 : vector<1x16x16xf32> to vector<16x16xf32>
      %277 = vector.shape_cast %256 : vector<16x16xf32> to vector<1x16x16xf32>
      tpu.vector_store %arg8[%c1_66, %c0_67, %c0_68], %277 {strides = array<i32>} : memref<3x16x16xf32, #tpu.memory_space<vmem>>, vector<1x16x16xf32>,
      %c2_69 = arith.constant 2 : index
      %c0_70 = arith.constant 0 : index
      %c0_71 = arith.constant 0 : index
      %278 = vector.load %arg8[%c2_69, %c0_70, %c0_71] : memref<3x16x16xf32, #tpu.memory_space<vmem>>, vector<1x16x16xf32>
      %279 = vector.shape_cast %278 : vector<1x16x16xf32> to vector<16x16xf32>
      %280 = vector.shape_cast %265 : vector<16x16xf32> to vector<1x16x16xf32>
      tpu.vector_store %arg8[%c2_69, %c0_70, %c0_71], %280 {strides = array<i32>} : memref<3x16x16xf32, #tpu.memory_space<vmem>>, vector<1x16x16xf32>,
    } else {
    }
    %c0_i32_61 = arith.constant 0 : i32
    %269 = arith.cmpi eq, %arg1, %c0_i32_61 : i32
    %270 = arith.extui %269 : i1 to i32
    %c0_i32_62 = arith.constant 0 : i32
    %271 = arith.cmpi ne, %270, %c0_i32_62 : i32
    scf.if %271 {
      %272 = tpu.iota {dimensions = array<i32: 0>} : vector<16x16xi32>
      %273 = tpu.iota {dimensions = array<i32: 1>} : vector<16x16xi32>
      %c1_i32_63 = arith.constant 1 : i32
      %274 = vector.broadcast %c1_i32_63 : i32 to vector<16x16xi32>
      %275 = arith.addi %272, %274 : vector<16x16xi32>
      %276 = arith.cmpi eq, %273, %275 : vector<16x16xi32>
      %277 = arith.extui %276 : vector<16x16xi1> to vector<16x16xi32>
      %278 = arith.sitofp %277 : vector<16x16xi32> to vector<16x16xf32>
      %c1_i32_64 = arith.constant 1 : i32
      %279 = vector.broadcast %c1_i32_64 : i32 to vector<16x16xi32>
      %280 = arith.subi %272, %279 : vector<16x16xi32>
      %281 = arith.cmpi eq, %273, %280 : vector<16x16xi32>
      %282 = arith.extui %281 : vector<16x16xi1> to vector<16x16xi32>
      %283 = arith.sitofp %282 : vector<16x16xi32> to vector<16x16xf32>
      %cst_65 = arith.constant dense<0.000000e+00> : vector<16x16xf32>
      %284 = tpu.matmul %247, %278, %cst_65 {dimension_numbers = #tpu.dot_dimension_numbers<[1], [0], [0], [1], [0, 0, 1, 1], [], []>} : vector<16x16xf32>, vector<16x16xf32>, vector<16x16xf32> -> vector<16x16xf32>
      %285 = arith.addf %256, %284 : vector<16x16xf32>
      %cst_66 = arith.constant dense<0.000000e+00> : vector<16x16xf32>
      %286 = tpu.matmul %265, %283, %cst_66 {dimension_numbers = #tpu.dot_dimension_numbers<[1], [0], [0], [1], [0, 0, 1, 1], [], []>} : vector<16x16xf32>, vector<16x16xf32>, vector<16x16xf32> -> vector<16x16xf32>
      %287 = arith.addf %285, %286 : vector<16x16xf32>
      %c0_67 = arith.constant 0 : index
      %288 = memref.load %arg3[%c0_67] : memref<1xf32, #tpu.memory_space<smem>>
      %289 = vector.broadcast %288 : f32 to vector<16x16xf32>
      %290 = arith.addf %287, %289 : vector<16x16xf32>
      %291 = arith.negf %290 : vector<16x16xf32>
      %292 = math.exp %291 : vector<16x16xf32>
      %cst_68 = arith.constant 1.000000e+00 : f32
      %293 = vector.broadcast %cst_68 : f32 to vector<16x16xf32>
      %294 = arith.addf %293, %292 : vector<16x16xf32>
      %295 = arith.divf %293, %294 : vector<16x16xf32>
      %c0_69 = arith.constant 0 : index
      %c0_70 = arith.constant 0 : index
      %296 = vector.load %arg5[%c0_69, %c0_70] : memref<32x16xbf16, #tpu.memory_space<vmem>>, vector<32x16xbf16>
      %297 = arith.truncf %295 : vector<16x16xf32> to vector<16x16xbf16>
      %cst_71 = arith.constant dense<0.000000e+00> : vector<32x16xf32>
      %298 = tpu.matmul %296, %297, %cst_71 {dimension_numbers = #tpu.dot_dimension_numbers<[1], [0], [0], [1], [0, 0, 1, 1], [], []>} : vector<32x16xbf16>, vector<16x16xbf16>, vector<32x16xf32> -> vector<32x16xf32>
      %299 = arith.truncf %298 : vector<32x16xf32> to vector<32x16xbf16>
      %c0_72 = arith.constant 0 : index
      %c0_73 = arith.constant 0 : index
      %300 = vector.load %arg6[%c0_72, %c0_73] : memref<16x32xbf16, #tpu.memory_space<vmem>>, vector<16x32xbf16>
      %cst_74 = arith.constant dense<0.000000e+00> : vector<32x32xf32>
      %301 = tpu.matmul %299, %300, %cst_74 {dimension_numbers = #tpu.dot_dimension_numbers<[1], [0], [0], [1], [0, 0, 1, 1], [], []>} : vector<32x16xbf16>, vector<16x32xbf16>, vector<32x32xf32> -> vector<32x32xf32>
      %c0_75 = arith.constant 0 : index
      %c0_76 = arith.constant 0 : index
      %c0_77 = arith.constant 0 : index
      %302 = vector.load %arg7[%c0_75, %c0_76, %c0_77] : memref<1x32x32xf32, #tpu.memory_space<vmem>>, vector<1x32x32xf32>
      %303 = vector.shape_cast %302 : vector<1x32x32xf32> to vector<32x32xf32>
      %304 = vector.shape_cast %301 : vector<32x32xf32> to vector<1x32x32xf32>
      tpu.vector_store %arg7[%c0_75, %c0_76, %c0_77], %304 {strides = array<i32>} : memref<1x32x32xf32, #tpu.memory_space<vmem>>, vector<1x32x32xf32>,
    } else {
    }
    return
  }
  func.func @transform_0(%arg0: i32, %arg1: i32) -> i32 {
    %c0_i32 = arith.constant 0 : i32
    %c0_i32_0 = arith.constant 0 : i32
    return %c0_i32 : i32
  }
  func.func @transform_1(%arg0: i32, %arg1: i32) -> i32 {
    %c0_i32 = arith.constant 0 : i32
    %c0_i32_0 = arith.constant 0 : i32
    return %c0_i32 : i32
  }
  func.func @transform_2(%arg0: i32, %arg1: i32) -> (i32, i32, i32, i32) {
    %c0_i32 = arith.constant 0 : i32
    %c0_i32_0 = arith.constant 0 : i32
    %c0_i32_1 = arith.constant 0 : i32
    return %arg0, %arg1, %c0_i32, %c0_i32_0 : i32, i32, i32, i32
  }
  func.func @transform_3(%arg0: i32, %arg1: i32) -> (i32, i32) {
    %c0_i32 = arith.constant 0 : i32
    %c0_i32_0 = arith.constant 0 : i32
    %c0_i32_1 = arith.constant 0 : i32
    return %c0_i32, %c0_i32_0 : i32, i32
  }
  func.func @transform_4(%arg0: i32, %arg1: i32) -> (i32, i32) {
    %c0_i32 = arith.constant 0 : i32
    %c0_i32_0 = arith.constant 0 : i32
    %c0_i32_1 = arith.constant 0 : i32
    return %c0_i32, %c0_i32_0 : i32, i32
  }
  func.func @transform_5(%arg0: i32, %arg1: i32) -> (i32, i32, i32) {
    %c0_i32 = arith.constant 0 : i32
    %c0_i32_0 = arith.constant 0 : i32
    %c0_i32_1 = arith.constant 0 : i32
    return %arg0, %c0_i32, %c0_i32_0 : i32, i32, i32
  }
}

</mosaic_0001>

<llo_original>
// kernel: tpu_custom_call.1
$region0: #{tpu_custom_call.1}
  #allocation0 [shape = 'u32[]', space=smem, size = 0x4, offset = 0x4, fixed_abs, tag = 'smem constant byte address 0x4 - core index']
  #allocation1 [shape = 'u32[144,128]{1,0:T(1,128)}', space=vmem, size = 0x12000, scoped, tag = 'internal scratch']
  #allocation2 [shape = 'f32[3,16,16]{2,1,0:T(8,128)}', space=vmem, size = 0x6000, scoped, tag = 'scratch operand']
  #allocation3 [shape = 'f32[1]{0:T(128)S(6)}', space=smem, size = 0x200, scoped, tag = 'scoped memory for tpu_custom_call.1']
  %s0 = inlined_call_operand.vmem [shape: f32[36], index: 0, kind: input, shape index: {}]
  %s1 = inlined_call_operand.<no memory space> [shape: f32[1], index: 1, kind: input, shape index: {}]
  %s2 = inlined_call_operand.hbm [shape: f32[2,4,16,16], index: 2, kind: input, shape index: {}]
  %s3 = inlined_call_operand.vmem [shape: bf16[32,16], index: 3, kind: input, shape index: {}]
  %s4 = inlined_call_operand.vmem [shape: bf16[16,32], index: 4, kind: input, shape index: {}]
  %s5 = inlined_call_operand.hbm [shape: f32[2,32,32], index: 5, kind: output, shape index: {}]
  %s6 = sld [smem:[#allocation0]]
  $region73: #{tpu_custom_call.1} parent=0
    _
  %s8 = ssub.s32 1, %s6
  %s9 = scalar_select 0, %s8, %s6
  %10 = sst [smem:[#allocation3]] %s1
  $region1: #{tpu_custom_call.1} parent=0
    #allocation4 [shape = 'u8[512]{0}', space=smem, size = 0x200, scoped, tag = 'input window, operand 0, single buffered']
    #allocation5 [shape = 's32[2]{0}', space=sflag, size = 0x8, scoped, tag = 'scoped memory for tpu_custom_call.1']
    #allocation6 [shape = 's32[2]{0}', space=sflag, size = 0x8, scoped, tag = 'scoped memory for tpu_custom_call.1']
    #allocation7 [shape = 's32[2]{0}', space=sflag, size = 0x8, scoped, tag = 'scoped memory for tpu_custom_call.1']
    #allocation8 [shape = 'u8[65536]{0}', space=vmem, size = 0x10000, scoped, tag = 'input window, operand 2']
    #allocation9 [shape = 'u8[32768]{0}', space=vmem, size = 0x8000, scoped, tag = 'output window, operand 0']
    %11 = vsyncpa [#allocation7], 0
    %12 = vsyncpa [#allocation5], 0
    %s13 = scalar_lea.sflag [#allocation5], 1
    %14 = vsyncpa %s13, 0
    %15 = vsyncpa [#allocation6], 0
    %s16 = scalar_lea.sflag [#allocation6], 1
    %17 = vsyncpa %s16, 0
    loop: start=0, step=1, limit=4
    $region2: #{tpu_custom_call.1} parent=1 // loop_pre_header
      _
    $region3: #{tpu_custom_call.1} parent=1 // loop_header
      %s19 = sphi 0, %s23
      %p20 = scmp.ge.s32.totalorder %s19, 4
      %s26 = sphi 0, %s38
      %s27 = sphi 0, %s34
      %s28 = sphi 0, %s26
      %s29 = sphi 0, %s27
      %s30 = sphi 0, %s28
      %s31 = sphi 0, %s29
      %s39 = sphi 0, %s39
      %s41 = sphi 0, %s39
      %s42 = sphi 0, %s41
      %s56 = sphi 0, %s42
      %s60 = sphi 0, %s60
      %s62 = sphi 0, %s60
      %s63 = sphi 0, %s62
      %s77 = sphi 0, %s63
      %s85 = sphi 0, %s87
      %s88 = sphi 0, %s85
      %s89 = sphi 0, %s88
      %s105 = sphi 0, %s89
      %s109 = sphi 0, %s109
      %s111 = sphi 0, %s109
      %s112 = sphi 0, %s111
      %s126 = sphi 0, %s112
      %s130 = sphi 0, %s130
      %s132 = sphi 0, %s130
      %s133 = sphi 0, %s132
      %s147 = sphi 0, %s133
      %s153 = sphi 0, %s155
      %s156 = sphi 0, %s153
      %s157 = sphi 0, %s156
      %s173 = sphi 0, %s157
    $region4: #{tpu_custom_call.1} parent=1 // loop_header_branch
      %22 = sbr.rel (%p20) target = $region8
    $region5: #{tpu_custom_call.1} parent=1 // loop_body
      %s24 = ssub.s32 %s19, 1
      %s25 = ssub.s32 %s19, 2
      %s32 = sadd.s32 1, %s27
      %p33 = scmp.ge.s32.totalorder %s32, 1
      %s34 = scalar_select %p33, 0, %s32
      %s35 = sadd.s32 1, %s26
      %s36 = scalar_select %p33, %s35, %s26
      %p37 = scmp.ge.s32.totalorder %s36, 2
      %s38 = scalar_select %p37, 0, %s36
      %s40 = sadd.s32 %s39, 1
      %p43 = scmp.eq.s32.totalorder %s19, 1
      %p44 = scmp.ne.s32.totalorder %s39, %s41
      %p45 = scmp.eq.s32.totalorder %s19, 0
      %p46 = por %p44, %p45
      %p47 = scmp.ne.s32.totalorder %s39, %s41
      %p48 = scmp.eq.s32.totalorder %s24, 1
      %p49 = por %p47, %p48
      %p50 = scmp.ne.s32.totalorder %s41, %s42
      %p51 = scmp.eq.s32.totalorder %s24, 0
      %p52 = por %p50, %p51
      %p53 = scmp.ne.s32.totalorder %s41, %s42
      %p54 = scmp.eq.s32.totalorder %s25, 1
      %p55 = por %p53, %p54
      %p57 = scmp.ne.s32.totalorder %s42, %s56
      %p58 = scmp.eq.s32.totalorder %s25, 0
      %p59 = por %p57, %p58
      %s61 = sadd.s32 %s60, 1
      %p64 = scmp.eq.s32.totalorder %s19, 1
      %p65 = scmp.ne.s32.totalorder %s60, %s62
      %p66 = scmp.eq.s32.totalorder %s19, 0
      %p67 = por %p65, %p66
      %p68 = scmp.ne.s32.totalorder %s60, %s62
      %p69 = scmp.eq.s32.totalorder %s24, 1
      %p70 = por %p68, %p69
      %p71 = scmp.ne.s32.totalorder %s62, %s63
      %p72 = scmp.eq.s32.totalorder %s24, 0
      %p73 = por %p71, %p72
      %p74 = scmp.ne.s32.totalorder %s62, %s63
      %p75 = scmp.eq.s32.totalorder %s25, 1
      %p76 = por %p74, %p75
      %p78 = scmp.ne.s32.totalorder %s63, %s77
      %p79 = scmp.eq.s32.totalorder %s25, 0
      %p80 = por %p78, %p79
      %s81 = ssub.s32 %s26, %s38
      %s82 = ssub.s32 %s27, %s34
      %s83 = sor.u32 %s81, %s82
      %p84 = scmp.eq.s32.totalorder %s83, 0
      %s86 = sadd.s32 %s85, 1
      %s87 = scalar_select %p84, %s85, %s86
      %p90 = pneg %p84
      %p91 = scmp.eq.s32.totalorder %s19, 1
      %p92 = por %p90, %p91
      %p93 = scmp.ne.s32.totalorder %s85, %s88
      %p94 = scmp.eq.s32.totalorder %s19, 0
      %p95 = por %p93, %p94
      %p96 = scmp.ne.s32.totalorder %s85, %s88
      %p97 = scmp.eq.s32.totalorder %s24, 1
      %p98 = por %p96, %p97
      %p99 = scmp.ne.s32.totalorder %s88, %s89
      %p100 = scmp.eq.s32.totalorder %s24, 0
      %p101 = por %p99, %p100
      %p102 = scmp.ne.s32.totalorder %s88, %s89
      %p103 = scmp.eq.s32.totalorder %s25, 1
      %p104 = por %p102, %p103
      %p106 = scmp.ne.s32.totalorder %s89, %s105
      %p107 = scmp.eq.s32.totalorder %s25, 0
      %p108 = por %p106, %p107
      %s110 = sadd.s32 %s109, 1
      %p113 = scmp.eq.s32.totalorder %s19, 1
      %p114 = scmp.ne.s32.totalorder %s109, %s111
      %p115 = scmp.eq.s32.totalorder %s19, 0
      %p116 = por %p114, %p115
      %p117 = scmp.ne.s32.totalorder %s109, %s111
      %p118 = scmp.eq.s32.totalorder %s24, 1
      %p119 = por %p117, %p118
      %p120 = scmp.ne.s32.totalorder %s111, %s112
      %p121 = scmp.eq.s32.totalorder %s24, 0
      %p122 = por %p120, %p121
      %p123 = scmp.ne.s32.totalorder %s111, %s112
      %p124 = scmp.eq.s32.totalorder %s25, 1
      %p125 = por %p123, %p124
      %p127 = scmp.ne.s32.totalorder %s112, %s126
      %p128 = scmp.eq.s32.totalorder %s25, 0
      %p129 = por %p127, %p128
      %s131 = sadd.s32 %s130, 1
      %p134 = scmp.eq.s32.totalorder %s19, 1
      %p135 = scmp.ne.s32.totalorder %s130, %s132
      %p136 = scmp.eq.s32.totalorder %s19, 0
      %p137 = por %p135, %p136
      %p138 = scmp.ne.s32.totalorder %s130, %s132
      %p139 = scmp.eq.s32.totalorder %s24, 1
      %p140 = por %p138, %p139
      %p141 = scmp.ne.s32.totalorder %s132, %s133
      %p142 = scmp.eq.s32.totalorder %s24, 0
      %p143 = por %p141, %p142
      %p144 = scmp.ne.s32.totalorder %s132, %s133
      %p145 = scmp.eq.s32.totalorder %s25, 1
      %p146 = por %p144, %p145
      %p148 = scmp.ne.s32.totalorder %s133, %s147
      %p149 = scmp.eq.s32.totalorder %s25, 0
      %p150 = por %p148, %p149
      %s151 = ssub.s32 %s26, %s38
      %p152 = scmp.eq.s32.totalorder %s151, 0
      %s154 = sadd.s32 %s153, 1
      %s155 = scalar_select %p152, %s153, %s154
      %p158 = pneg %p152
      %p159 = scmp.eq.s32.totalorder %s19, 1
      %p160 = por %p158, %p159
      %p161 = scmp.ne.s32.totalorder %s153, %s156
      %p162 = scmp.eq.s32.totalorder %s19, 0
      %p163 = por %p161, %p162
      %p164 = scmp.ne.s32.totalorder %s153, %s156
      %p165 = scmp.eq.s32.totalorder %s24, 1
      %p166 = por %p164, %p165
      %p167 = scmp.ne.s32.totalorder %s156, %s157
      %p168 = scmp.eq.s32.totalorder %s24, 0
      %p169 = por %p167, %p168
      %p170 = scmp.ne.s32.totalorder %s156, %s157
      %p171 = scmp.eq.s32.totalorder %s25, 1
      %p172 = por %p170, %p171
      %p174 = scmp.ne.s32.totalorder %s157, %s173
      %p175 = scmp.eq.s32.totalorder %s25, 0
      %p176 = por %p174, %p175
      %p177 = scmp.le.s32.totalorder 1, %s19
      %p178 = scmp.lt.s32.totalorder %s19, 3
      %p179 = pnand %p177, %p178
      %p180 = pneg %p179
      // Predicated region
      $region9: #{tpu_custom_call.1} parent=5 // pred_check
        _
      $region10: #{tpu_custom_call.1} parent=5 // pred_check_branch
        %182 = sbr.rel (%p179) target = $region12
      $region11: #{tpu_custom_call.1} parent=5 // pred_region
        %s183 = ssub.s32 %s19, 1
        // Predicated region
        $region13: #{tpu_custom_call.1} parent=11 // pred_check
          %p184 = pneg %p52
        $region14: #{tpu_custom_call.1} parent=11 // pred_check_branch
          %186 = sbr.rel (%p184) target = $region16
        $region15: #{tpu_custom_call.1} parent=11 // pred_region
          %s188 = ssub.s32 16, 16
          %189 = vsyncadd [#allocation7], %s188
          %s191 = sshll.u32 %s0, 4
          %s192 = int_to_ptr.vmem [resolvable:$true] %s191
          %194 = dma.vmem_to_smem %s192, 16, [#allocation4], [#allocation7]
        $region16: #{tpu_custom_call.1} parent=11 // pred_fallthru
          _
        // Predicated region
        $region17: #{tpu_custom_call.1} parent=11 // pred_check
          %p195 = pneg %p73
        $region18: #{tpu_custom_call.1} parent=11 // pred_check_branch
          %197 = sbr.rel (%p195) target = $region20
        $region19: #{tpu_custom_call.1} parent=11 // pred_region
          _
        $region20: #{tpu_custom_call.1} parent=11 // pred_fallthru
          _
        // Predicated region
        $region21: #{tpu_custom_call.1} parent=11 // pred_check
          %p198 = pneg %p122
        $region22: #{tpu_custom_call.1} parent=11 // pred_check_branch
          %200 = sbr.rel (%p198) target = $region24
        $region23: #{tpu_custom_call.1} parent=11 // pred_region
          _
        $region24: #{tpu_custom_call.1} parent=11 // pred_fallthru
          _
        // Predicated region
        $region25: #{tpu_custom_call.1} parent=11 // pred_check
          %p201 = pneg %p143
        $region26: #{tpu_custom_call.1} parent=11 // pred_check_branch
          %203 = sbr.rel (%p201) target = $region28
        $region27: #{tpu_custom_call.1} parent=11 // pred_region
          _
        $region28: #{tpu_custom_call.1} parent=11 // pred_fallthru
          _
      $region12: #{tpu_custom_call.1} parent=5 // pred_fallthru
        _
      %p204 = scmp.lt.s32.totalorder %s19, 2
      // Predicated region
      $region29: #{tpu_custom_call.1} parent=5 // pred_check
        %p205 = pneg %p204
      $region30: #{tpu_custom_call.1} parent=5 // pred_check_branch
        %207 = sbr.rel (%p205) target = $region32
      $region31: #{tpu_custom_call.1} parent=5 // pred_region
        // Predicated region
        $region33: #{tpu_custom_call.1} parent=31 // pred_check
          %p208 = pneg %p95
        $region34: #{tpu_custom_call.1} parent=31 // pred_check_branch
          %210 = sbr.rel (%p208) target = $region36
        $region35: #{tpu_custom_call.1} parent=31 // pred_region
          %s211 = sand.u32 %s85, 1
          %s212 = scalar_lea.sflag [#allocation5], %s211
          %s213 = sand.u32 %s85, 1
          %s214 = smul.addr %s213, 64
          %s215 = scalar_lea.vmem [#allocation8], %s214
          %s216 = smul.u32 4, %s27
          %s218 = ssub.s32 1024, 1024
          %219 = vsyncadd %s212, %s218
          %s220 = smul.addr %s216, 2
          %s221 = smul.addr %s26, 8
          %s222 = sadd.s32 %s220, %s221
          %s223 = smul.addr %s222, 128
          %s224 = scalar_lea.hbm %s2, %s223
          %s225 = sshll.u32 %s215, 4
          %s226 = int_to_ptr.vmem [resolvable:$true] %s225
          %231 = dma.hbm_to_vmem [thread:$0]  %s224, 1024, %s226, %s212, 128, 128, 8
        $region36: #{tpu_custom_call.1} parent=31 // pred_fallthru
          _
      $region32: #{tpu_custom_call.1} parent=5 // pred_fallthru
        _
      %p232 = scmp.le.s32.totalorder 1, %s19
      %p233 = scmp.lt.s32.totalorder %s19, 3
      %p234 = pnand %p232, %p233
      %p235 = pneg %p234
      // Predicated region
      $region37: #{tpu_custom_call.1} parent=5 // pred_check
        _
      $region38: #{tpu_custom_call.1} parent=5 // pred_check_branch
        %237 = sbr.rel (%p234) target = $region40
      $region39: #{tpu_custom_call.1} parent=5 // pred_region
        %s238 = ssub.s32 %s19, 1
        // Predicated region
        $region41: #{tpu_custom_call.1} parent=39 // pred_check
          %p239 = pneg %p52
        $region42: #{tpu_custom_call.1} parent=39 // pred_check_branch
          %241 = sbr.rel (%p239) target = $region44
        $region43: #{tpu_custom_call.1} parent=39 // pred_region
          %242 = dma.done [#allocation7], 16
        $region44: #{tpu_custom_call.1} parent=39 // pred_fallthru
          _
        %s243 = sand.u32 %s88, 1
        %s244 = scalar_lea.sflag [#allocation5], %s243
        %s245 = sand.u32 %s88, 1
        %s246 = smul.addr %s245, 64
        %s247 = scalar_lea.vmem [#allocation8], %s246
        // Predicated region
        $region45: #{tpu_custom_call.1} parent=39 // pred_check
          %p248 = pneg %p101
        $region46: #{tpu_custom_call.1} parent=39 // pred_check_branch
          %250 = sbr.rel (%p248) target = $region48
        $region47: #{tpu_custom_call.1} parent=39 // pred_region
          %251 = dma.done %s244, 1024
        $region48: #{tpu_custom_call.1} parent=39 // pred_fallthru
          _
        %252 = sfence
        %p253 = pneg %p52
        %p254 = pneg %p49
        %p255 = pneg %p73
        %p256 = pneg %p70
        %s257 = sand.u32 %s88, 1
        %s258 = scalar_lea.sflag [#allocation5], %s257
        %s259 = sand.u32 %s88, 1
        %s260 = smul.addr %s259, 64
        %s261 = scalar_lea.vmem [#allocation8], %s260
        %p262 = pneg %p101
        %p263 = pneg %p98
        %p264 = pneg %p122
        %p265 = pneg %p119
        %p266 = pneg %p143
        %p267 = pneg %p140
        %p268 = pneg %p169
        %p269 = pneg %p166
        %s270 = sand.u32 %s156, 1
        %s271 = scalar_lea.sflag [#allocation6], %s270
        %s272 = sand.u32 %s156, 1
        %s273 = smul.addr %s272, 32
        %s274 = scalar_lea.vmem [#allocation9], %s273
        %s275 = smul.u32 4, %s29
        %p277 = scmp.eq.s32.totalorder %s29, 0
        // Predicated region
        $region49: #{tpu_custom_call.1} parent=39 // pred_check
          %p278 = pneg %p277
        $region50: #{tpu_custom_call.1} parent=39 // pred_check_branch
          %280 = sbr.rel (%p278) target = $region52
        $region51: #{tpu_custom_call.1} parent=39 // pred_region
          %vm281 = vcmask 130048
          %282 = vst.msk [vmem:[#allocation2] sm:$0xff] %vm281, 0.0
          %283 = vst.msk [vmem:[#allocation2 + $0x8] sm:$0xff] %vm281, 0.0
          %284 = vst.msk [vmem:[#allocation2 + $0x10] sm:$0xff] %vm281, 0.0
          %285 = vst.msk [vmem:[#allocation2 + $0x18] sm:$0xff] %vm281, 0.0
          %286 = vst.msk [vmem:[#allocation2 + $0x20] sm:$0xff] %vm281, 0.0
          %287 = vst.msk [vmem:[#allocation2 + $0x28] sm:$0xff] %vm281, 0.0
        $region52: #{tpu_custom_call.1} parent=39 // pred_fallthru
          _
        %v288 = vld [vmem:[#allocation2] sm:$0xff]
        %v289 = vld [vmem:[#allocation2 + $0x8] sm:$0xff]
        %s290 = scalar_lea.vmem [#allocation2], 16
        %v291 = vld [vmem:[%s290] sm:$0xff]
        %v292 = vld [vmem:[%s290 + $0x8] sm:$0xff]
        %s293 = scalar_lea.vmem [#allocation2], 32
        %v294 = vld [vmem:[%s293] sm:$0xff]
        %v295 = vld [vmem:[%s293 + $0x8] sm:$0xff]
        %v296 = vld [vmem:[%s247] sm:$0xff]
        %v297 = vld [vmem:[%s247 + $0x8] sm:$0xff]
        %s298 = smul.u32 %s29, 36
        %s299 = sld [smem:[#allocation4 + %s298]]
        %s300 = sadd.s32 %s298, 1
        %s301 = sld [smem:[#allocation4 + %s300]]
        %s302 = sadd.s32 %s298, 2
        %s303 = sld [smem:[#allocation4 + %s302]]
        %s304 = sadd.s32 %s298, 3
        %s305 = sld [smem:[#allocation4 + %s304]]
        %s306 = sadd.s32 %s298, 4
        %s307 = sld [smem:[#allocation4 + %s306]]
        %s308 = sadd.s32 %s298, 5
        %s309 = sld [smem:[#allocation4 + %s308]]
        %s310 = sadd.s32 %s298, 6
        %s311 = sld [smem:[#allocation4 + %s310]]
        %s312 = sadd.s32 %s298, 7
        %s313 = sld [smem:[#allocation4 + %s312]]
        %s314 = sadd.s32 %s298, 8
        %s315 = sld [smem:[#allocation4 + %s314]]
        %vm318 = vcmask 1040384
        %v319 = vrot.slane %v296, 7
        %v320 = vrot.slane %v297, 7
        %v321 = vsel %vm318, %v319, %v320
        %v324 = vsel %vm318, 0.0, %v319
        %vm325 = vcmask 1046528
        %v326 = vrot.slane %v296, 1
        %v327 = vrot.slane %v297, 1
        %v328 = vsel %vm325, %v326, %v327
        %v331 = vsel %vm325, %v327, 0.0
        %v332 = vstv %s299
        %v333 = vmul.f32 %v324, %v332
        %v334 = vmul.f32 %v321, %v332
        %v335 = vadd.f32 %v288, %v333
        %v336 = vadd.f32 %v289, %v334
        %v337 = vstv %s305
        %v338 = vmul.f32 %v296, %v337
        %v339 = vmul.f32 %v297, %v337
        %v340 = vadd.f32 %v335, %v338
        %v341 = vadd.f32 %v336, %v339
        %v342 = vstv %s311
        %v343 = vmul.f32 %v328, %v342
        %v344 = vmul.f32 %v331, %v342
        %v345 = vadd.f32 %v340, %v343
        %v346 = vadd.f32 %v341, %v344
        %v347 = vstv %s301
        %v348 = vmul.f32 %v324, %v347
        %v349 = vmul.f32 %v321, %v347
        %v350 = vadd.f32 %v291, %v348
        %v351 = vadd.f32 %v292, %v349
        %v352 = vstv %s307
        %v353 = vmul.f32 %v296, %v352
        %v354 = vmul.f32 %v297, %v352
        %v355 = vadd.f32 %v350, %v353
        %v356 = vadd.f32 %v351, %v354
        %v357 = vstv %s313
        %v358 = vmul.f32 %v328, %v357
        %v359 = vmul.f32 %v331, %v357
        %v360 = vadd.f32 %v355, %v358
        %v361 = vadd.f32 %v356, %v359
        %v362 = vstv %s303
        %v363 = vmul.f32 %v324, %v362
        %v364 = vmul.f32 %v321, %v362
        %v365 = vadd.f32 %v294, %v363
        %v366 = vadd.f32 %v295, %v364
        %v367 = vstv %s309
        %v368 = vmul.f32 %v296, %v367
        %v369 = vmul.f32 %v297, %v367
        %v370 = vadd.f32 %v365, %v368
        %v371 = vadd.f32 %v366, %v369
        %v372 = vstv %s315
        %v373 = vmul.f32 %v328, %v372
        %v374 = vmul.f32 %v331, %v372
        %v375 = vadd.f32 %v370, %v373
        %v376 = vadd.f32 %v371, %v374
        %s377 = scalar_lea.vmem %s247, 16 [#allocation8]
        %v378 = vld [vmem:[%s377] sm:$0xff]
        %v379 = vld [vmem:[%s377 + $0x8] sm:$0xff]
        %s380 = smul.u32 %s29, 4
        %s381 = sadd.s32 %s380, 1
        %s382 = smul.u32 %s381, 9
        %s383 = sld [smem:[#allocation4 + %s382]]
        %s384 = sadd.s32 %s382, 1
        %s385 = sld [smem:[#allocation4 + %s384]]
        %s386 = sadd.s32 %s382, 2
        %s387 = sld [smem:[#allocation4 + %s386]]
        %s388 = sadd.s32 %s382, 3
        %s389 = sld [smem:[#allocation4 + %s388]]
        %s390 = sadd.s32 %s382, 4
        %s391 = sld [smem:[#allocation4 + %s390]]
        %s392 = sadd.s32 %s382, 5
        %s393 = sld [smem:[#allocation4 + %s392]]
        %s394 = sadd.s32 %s382, 6
        %s395 = sld [smem:[#allocation4 + %s394]]
        %s396 = sadd.s32 %s382, 7
        %s397 = sld [smem:[#allocation4 + %s396]]
        %s398 = sadd.s32 %s382, 8
        %s399 = sld [smem:[#allocation4 + %s398]]
        %v402 = vrot.slane %v378, 7
        %v403 = vrot.slane %v379, 7
        %v404 = vsel %vm318, %v402, %v403
        %v407 = vsel %vm318, 0.0, %v402
        %v408 = vrot.slane %v378, 1
        %v409 = vrot.slane %v379, 1
        %v410 = vsel %vm325, %v408, %v409
        %v413 = vsel %vm325, %v409, 0.0
        %v414 = vstv %s383
        %v415 = vmul.f32 %v407, %v414
        %v416 = vmul.f32 %v404, %v414
        %v417 = vadd.f32 %v345, %v415
        %v418 = vadd.f32 %v346, %v416
        %v419 = vstv %s389
        %v420 = vmul.f32 %v378, %v419
        %v421 = vmul.f32 %v379, %v419
        %v422 = vadd.f32 %v417, %v420
        %v423 = vadd.f32 %v418, %v421
        %v424 = vstv %s395
        %v425 = vmul.f32 %v410, %v424
        %v426 = vmul.f32 %v413, %v424
        %v427 = vadd.f32 %v422, %v425
        %v428 = vadd.f32 %v423, %v426
        %v429 = vstv %s385
        %v430 = vmul.f32 %v407, %v429
        %v431 = vmul.f32 %v404, %v429
        %v432 = vadd.f32 %v360, %v430
        %v433 = vadd.f32 %v361, %v431
        %v434 = vstv %s391
        %v435 = vmul.f32 %v378, %v434
        %v436 = vmul.f32 %v379, %v434
        %v437 = vadd.f32 %v432, %v435
        %v438 = vadd.f32 %v433, %v436
        %v439 = vstv %s397
        %v440 = vmul.f32 %v410, %v439
        %v441 = vmul.f32 %v413, %v439
        %v442 = vadd.f32 %v437, %v440
        %v443 = vadd.f32 %v438, %v441
        %v444 = vstv %s387
        %v445 = vmul.f32 %v407, %v444
        %v446 = vmul.f32 %v404, %v444
        %v447 = vadd.f32 %v375, %v445
        %v448 = vadd.f32 %v376, %v446
        %v449 = vstv %s393
        %v450 = vmul.f32 %v378, %v449
        %v451 = vmul.f32 %v379, %v449
        %v452 = vadd.f32 %v447, %v450
        %v453 = vadd.f32 %v448, %v451
        %v454 = vstv %s399
        %v455 = vmul.f32 %v410, %v454
        %v456 = vmul.f32 %v413, %v454
        %v457 = vadd.f32 %v452, %v455
        %v458 = vadd.f32 %v453, %v456
        %s459 = scalar_lea.vmem %s247, 32 [#allocation8]
        %v460 = vld [vmem:[%s459] sm:$0xff]
        %v461 = vld [vmem:[%s459 + $0x8] sm:$0xff]
        %s462 = sadd.s32 %s380, 2
        %s463 = smul.u32 %s462, 9
        %s464 = sld [smem:[#allocation4 + %s463]]
        %s465 = sadd.s32 %s463, 1
        %s466 = sld [smem:[#allocation4 + %s465]]
        %s467 = sadd.s32 %s463, 2
        %s468 = sld [smem:[#allocation4 + %s467]]
        %s469 = sadd.s32 %s463, 3
        %s470 = sld [smem:[#allocation4 + %s469]]
        %s471 = sadd.s32 %s463, 4
        %s472 = sld [smem:[#allocation4 + %s471]]
        %s473 = sadd.s32 %s463, 5
        %s474 = sld [smem:[#allocation4 + %s473]]
        %s475 = sadd.s32 %s463, 6
        %s476 = sld [smem:[#allocation4 + %s475]]
        %s477 = sadd.s32 %s463, 7
        %s478 = sld [smem:[#allocation4 + %s477]]
        %s479 = sadd.s32 %s463, 8
        %s480 = sld [smem:[#allocation4 + %s479]]
        %v483 = vrot.slane %v460, 7
        %v484 = vrot.slane %v461, 7
        %v485 = vsel %vm318, %v483, %v484
        %v488 = vsel %vm318, 0.0, %v483
        %v489 = vrot.slane %v460, 1
        %v490 = vrot.slane %v461, 1
        %v491 = vsel %vm325, %v489, %v490
        %v494 = vsel %vm325, %v490, 0.0
        %v495 = vstv %s464
        %v496 = vmul.f32 %v488, %v495
        %v497 = vmul.f32 %v485, %v495
        %v498 = vadd.f32 %v427, %v496
        %v499 = vadd.f32 %v428, %v497
        %v500 = vstv %s470
        %v501 = vmul.f32 %v460, %v500
        %v502 = vmul.f32 %v461, %v500
        %v503 = vadd.f32 %v498, %v501
        %v504 = vadd.f32 %v499, %v502
        %v505 = vstv %s476
        %v506 = vmul.f32 %v491, %v505
        %v507 = vmul.f32 %v494, %v505
        %v508 = vadd.f32 %v503, %v506
        %v509 = vadd.f32 %v504, %v507
        %v510 = vstv %s466
        %v511 = vmul.f32 %v488, %v510
        %v512 = vmul.f32 %v485, %v510
        %v513 = vadd.f32 %v442, %v511
        %v514 = vadd.f32 %v443, %v512
        %v515 = vstv %s472
        %v516 = vmul.f32 %v460, %v515
        %v517 = vmul.f32 %v461, %v515
        %v518 = vadd.f32 %v513, %v516
        %v519 = vadd.f32 %v514, %v517
        %v520 = vstv %s478
        %v521 = vmul.f32 %v491, %v520
        %v522 = vmul.f32 %v494, %v520
        %v523 = vadd.f32 %v518, %v521
        %v524 = vadd.f32 %v519, %v522
        %v525 = vstv %s468
        %v526 = vmul.f32 %v488, %v525
        %v527 = vmul.f32 %v485, %v525
        %v528 = vadd.f32 %v457, %v526
        %v529 = vadd.f32 %v458, %v527
        %v530 = vstv %s474
        %v531 = vmul.f32 %v460, %v530
        %v532 = vmul.f32 %v461, %v530
        %v533 = vadd.f32 %v528, %v531
        %v534 = vadd.f32 %v529, %v532
        %v535 = vstv %s480
        %v536 = vmul.f32 %v491, %v535
        %v537 = vmul.f32 %v494, %v535
        %v538 = vadd.f32 %v533, %v536
        %v539 = vadd.f32 %v534, %v537
        %s540 = scalar_lea.vmem %s247, 48 [#allocation8]
        %v541 = vld [vmem:[%s540] sm:$0xff]
        %v542 = vld [vmem:[%s540 + $0x8] sm:$0xff]
        %s543 = sadd.s32 %s380, 3
        %s544 = smul.u32 %s543, 9
        %s545 = sld [smem:[#allocation4 + %s544]]
        %s546 = sadd.s32 %s544, 1
        %s547 = sld [smem:[#allocation4 + %s546]]
        %s548 = sadd.s32 %s544, 2
        %s549 = sld [smem:[#allocation4 + %s548]]
        %s550 = sadd.s32 %s544, 3
        %s551 = sld [smem:[#allocation4 + %s550]]
        %s552 = sadd.s32 %s544, 4
        %s553 = sld [smem:[#allocation4 + %s552]]
        %s554 = sadd.s32 %s544, 5
        %s555 = sld [smem:[#allocation4 + %s554]]
        %s556 = sadd.s32 %s544, 6
        %s557 = sld [smem:[#allocation4 + %s556]]
        %s558 = sadd.s32 %s544, 7
        %s559 = sld [smem:[#allocation4 + %s558]]
        %s560 = sadd.s32 %s544, 8
        %s561 = sld [smem:[#allocation4 + %s560]]
        %v564 = vrot.slane %v541, 7
        %v565 = vrot.slane %v542, 7
        %v566 = vsel %vm318, %v564, %v565
        %v569 = vsel %vm318, 0.0, %v564
        %v570 = vrot.slane %v541, 1
        %v571 = vrot.slane %v542, 1
        %v572 = vsel %vm325, %v570, %v571
        %v575 = vsel %vm325, %v571, 0.0
        %v576 = vstv %s545
        %v577 = vmul.f32 %v569, %v576
        %v578 = vmul.f32 %v566, %v576
        %v579 = vadd.f32 %v508, %v577
        %v580 = vadd.f32 %v509, %v578
        %v581 = vstv %s551
        %v582 = vmul.f32 %v541, %v581
        %v583 = vmul.f32 %v542, %v581
        %v584 = vadd.f32 %v579, %v582
        %v585 = vadd.f32 %v580, %v583
        %v586 = vstv %s557
        %v587 = vmul.f32 %v572, %v586
        %v588 = vmul.f32 %v575, %v586
        %v589 = vadd.f32 %v584, %v587
        %v590 = vadd.f32 %v585, %v588
        %v591 = vstv %s547
        %v592 = vmul.f32 %v569, %v591
        %v593 = vmul.f32 %v566, %v591
        %v594 = vadd.f32 %v523, %v592
        %v595 = vadd.f32 %v524, %v593
        %v596 = vstv %s553
        %v597 = vmul.f32 %v541, %v596
        %v598 = vmul.f32 %v542, %v596
        %v599 = vadd.f32 %v594, %v597
        %v600 = vadd.f32 %v595, %v598
        %v601 = vstv %s559
        %v602 = vmul.f32 %v572, %v601
        %v603 = vmul.f32 %v575, %v601
        %v604 = vadd.f32 %v599, %v602
        %v605 = vadd.f32 %v600, %v603
        %v606 = vstv %s549
        %v607 = vmul.f32 %v569, %v606
        %v608 = vmul.f32 %v566, %v606
        %v609 = vadd.f32 %v538, %v607
        %v610 = vadd.f32 %v539, %v608
        %v611 = vstv %s555
        %v612 = vmul.f32 %v541, %v611
        %v613 = vmul.f32 %v542, %v611
        %v614 = vadd.f32 %v609, %v612
        %v615 = vadd.f32 %v610, %v613
        %v616 = vstv %s561
        %v617 = vmul.f32 %v572, %v616
        %v618 = vmul.f32 %v575, %v616
        %v619 = vadd.f32 %v614, %v617
        %v620 = vadd.f32 %v615, %v618
        %p621 = scmp.lt.s32.totalorder %s29, 0
        // Predicated region
        $region53: #{tpu_custom_call.1} parent=39 // pred_check
          %p622 = pneg %p621
        $region54: #{tpu_custom_call.1} parent=39 // pred_check_branch
          %624 = sbr.rel (%p622) target = $region56
        $region55: #{tpu_custom_call.1} parent=39 // pred_region
          %vm625 = vcmask 130048
          %626 = vst.msk [vmem:[#allocation2] sm:$0xff] %vm625, %v589
          %627 = vst.msk [vmem:[#allocation2 + $0x8] sm:$0xff] %vm625, %v590
          %628 = vst.msk [vmem:[%s290] sm:$0xff] %vm625, %v604
          %629 = vst.msk [vmem:[%s290 + $0x8] sm:$0xff] %vm625, %v605
          %630 = vst.msk [vmem:[%s293] sm:$0xff] %vm625, %v619
          %631 = vst.msk [vmem:[%s293 + $0x8] sm:$0xff] %vm625, %v620
        $region56: #{tpu_custom_call.1} parent=39 // pred_fallthru
          _
        // Predicated region
        $region57: #{tpu_custom_call.1} parent=39 // pred_check
          %p632 = pneg %p277
        $region58: #{tpu_custom_call.1} parent=39 // pred_check_branch
          %634 = sbr.rel (%p632) target = $region60
        $region59: #{tpu_custom_call.1} parent=39 // pred_region
          %v635 = vlaneseq
          %v636 = vshrl.u32 %v635, 7
          %v637 = vadd.s32 %v636, 8
          %v638 = vlaneseq
          %v639 = vand.u32 %v638, 127
          %v640 = vadd.s32 %v636, 1
          %v641 = vadd.s32 %v637, 1
          %vm642 = vcmp.eq.s32.totalorder %v639, %v640
          %vm643 = vcmp.eq.s32.totalorder %v639, %v641
          %v644 = vsel %vm642, 1, 0
          %v645 = vsel %vm643, 1, 0
          %v646 = vcvt.s32.f32 %v644
          %v647 = vcvt.s32.f32 %v645
          %v648 = vsub.s32 %v636, 1
          %v649 = vsub.s32 %v637, 1
          %vm650 = vcmp.eq.s32.totalorder %v639, %v648
          %vm651 = vcmp.eq.s32.totalorder %v639, %v649
          %v652 = vsel %vm650, 1, 0
          %v653 = vsel %vm651, 1, 0
          %v654 = vcvt.s32.f32 %v652
          %v655 = vcvt.s32.f32 %v653
          %vm656 = vcmask 130048
          %v658 = vsel %vm656, %v589, 0
          %v661 = vsel %vm656, %v590, 0
          %663 = vmatprep.subr.mxu0 0.0
          %664 = vmatpush1.msra.mxu0 0.0
          %665 = vmatprep.subr.mxu0 0.0
          %666 = vmatpush1.msra.mxu0 0.0
          %667 = vmatprep.subr.mxu0 0.0
          %668 = vmatpush1.msra.mxu0 0.0
          %669 = vmatprep.subr.mxu0 0.0
          %670 = vmatpush1.msra.mxu0 0.0
          %671 = vmatprep.subr.mxu0 0.0
          %672 = vmatpush1.msra.mxu0 0.0
          %673 = vmatprep.subr.mxu0 0.0
          %674 = vmatpush1.msra.mxu0 0.0
          %675 = vmatprep.subr.mxu0 0.0
          %676 = vmatpush1.msra.mxu0 0.0
          %677 = vmatprep.subr.mxu0 0.0
          %678 = vmatpush1.msra.mxu0 0.0
          %679 = vmatprep.subr.mxu0 0.0
          %680 = vmatpush1.msra.mxu0 0.0
          %681 = vmatprep.subr.mxu0 0.0
          %682 = vmatpush1.msra.mxu0 0.0
          %683 = vmatprep.subr.mxu0 0.0
          %684 = vmatpush1.msra.mxu0 0.0
          %685 = vmatprep.subr.mxu0 0.0
          %686 = vmatpush1.msra.mxu0 0.0
          %687 = vmatprep.subr.mxu0 0.0
          %688 = vmatpush1.msra.mxu0 0.0
          %689 = vmatprep.subr.mxu0 0.0
          %690 = vmatpush1.msra.mxu0 0.0
          %691 = vmatprep.subr.mxu0 0.0
          %692 = vmatpush1.msra.mxu0 %v647
          %693 = vmatprep.subr.mxu0 0.0
          %694 = vmatpush1.msra.mxu0 %v646
          %695 = vmatprep.subr.mxu0 0.0
          %696 = vmatpush2.msra.mxu0 0.0
          %697 = vmatprep.subr.mxu0 0.0
          %698 = vmatpush2.msra.mxu0 0.0
          %699 = vmatprep.subr.mxu0 0.0
          %700 = vmatpush2.msra.mxu0 0.0
          %701 = vmatprep.subr.mxu0 0.0
          %702 = vmatpush2.msra.mxu0 0.0
          %703 = vmatprep.subr.mxu0 0.0
          %704 = vmatpush2.msra.mxu0 0.0
          %705 = vmatprep.subr.mxu0 0.0
          %706 = vmatpush2.msra.mxu0 0.0
          %707 = vmatprep.subr.mxu0 0.0
          %708 = vmatpush2.msra.mxu0 0.0
          %709 = vmatprep.subr.mxu0 0.0
          %710 = vmatpush2.msra.mxu0 0.0
          %711 = vmatprep.subr.mxu0 0.0
          %712 = vmatpush2.msra.mxu0 0.0
          %713 = vmatprep.subr.mxu0 0.0
          %714 = vmatpush2.msra.mxu0 0.0
          %715 = vmatprep.subr.mxu0 0.0
          %716 = vmatpush2.msra.mxu0 0.0
          %717 = vmatprep.subr.mxu0 0.0
          %718 = vmatpush2.msra.mxu0 0.0
          %719 = vmatprep.subr.mxu0 0.0
          %720 = vmatpush2.msra.mxu0 0.0
          %721 = vmatprep.subr.mxu0 0.0
          %722 = vmatpush2.msra.mxu0 0.0
          %723 = vmatprep.subr.mxu0 0.0
          %724 = vmatpush2.msra.mxu0 0.0
          %725 = vmatprep.subr.mxu0 0.0
          %726 = vmatpush2.msra.mxu0 0.0
          %727 = vmatprep.mubr.f32.mxu0 0.0
          %728 = vmatmul.mubr.f32.gmra.mxu0 %v658
          %v729 = vpop.f32.mrf.mxu0
          %v730 = vadd.f32 0.0, %v729
          %v731 = vpop.f32.mrf.mxu0
          %732 = vmatprep.mubr.f32.mxu0 0.0
          %733 = vmatmul.mubr.f32.gmra.mxu0 %v661
          %v734 = vpop.f32.mrf.mxu0
          %v735 = vadd.f32 0.0, %v734
          %v736 = vpop.f32.mrf.mxu0
          %737 = vdwg.mxu0
          %v738 = vadd.f32 %v604, %v730
          %v739 = vadd.f32 %v605, %v735
          %v741 = vsel %vm656, %v619, 0
          %v744 = vsel %vm656, %v620, 0
          %746 = vmatprep.subr.mxu0 0.0
          %747 = vmatpush1.msra.mxu0 0.0
          %748 = vmatprep.subr.mxu0 0.0
          %749 = vmatpush1.msra.mxu0 0.0
          %750 = vmatprep.subr.mxu0 0.0
          %751 = vmatpush1.msra.mxu0 0.0
          %752 = vmatprep.subr.mxu0 0.0
          %753 = vmatpush1.msra.mxu0 0.0
          %754 = vmatprep.subr.mxu0 0.0
          %755 = vmatpush1.msra.mxu0 0.0
          %756 = vmatprep.subr.mxu0 0.0
          %757 = vmatpush1.msra.mxu0 0.0
          %758 = vmatprep.subr.mxu0 0.0
          %759 = vmatpush1.msra.mxu0 0.0
          %760 = vmatprep.subr.mxu0 0.0
          %761 = vmatpush1.msra.mxu0 0.0
          %762 = vmatprep.subr.mxu0 0.0
          %763 = vmatpush1.msra.mxu0 0.0
          %764 = vmatprep.subr.mxu0 0.0
          %765 = vmatpush1.msra.mxu0 0.0
          %766 = vmatprep.subr.mxu0 0.0
          %767 = vmatpush1.msra.mxu0 0.0
          %768 = vmatprep.subr.mxu0 0.0
          %769 = vmatpush1.msra.mxu0 0.0
          %770 = vmatprep.subr.mxu0 0.0
          %771 = vmatpush1.msra.mxu0 0.0
          %772 = vmatprep.subr.mxu0 0.0
          %773 = vmatpush1.msra.mxu0 0.0
          %774 = vmatprep.subr.mxu0 0.0
          %775 = vmatpush1.msra.mxu0 %v655
          %776 = vmatprep.subr.mxu0 0.0
          %777 = vmatpush1.msra.mxu0 %v654
          %778 = vmatprep.subr.mxu0 0.0
          %779 = vmatpush2.msra.mxu0 0.0
          %780 = vmatprep.subr.mxu0 0.0
          %781 = vmatpush2.msra.mxu0 0.0
          %782 = vmatprep.subr.mxu0 0.0
          %783 = vmatpush2.msra.mxu0 0.0
          %784 = vmatprep.subr.mxu0 0.0
          %785 = vmatpush2.msra.mxu0 0.0
          %786 = vmatprep.subr.mxu0 0.0
          %787 = vmatpush2.msra.mxu0 0.0
          %788 = vmatprep.subr.mxu0 0.0
          %789 = vmatpush2.msra.mxu0 0.0
          %790 = vmatprep.subr.mxu0 0.0
          %791 = vmatpush2.msra.mxu0 0.0
          %792 = vmatprep.subr.mxu0 0.0
          %793 = vmatpush2.msra.mxu0 0.0
          %794 = vmatprep.subr.mxu0 0.0
          %795 = vmatpush2.msra.mxu0 0.0
          %796 = vmatprep.subr.mxu0 0.0
          %797 = vmatpush2.msra.mxu0 0.0
          %798 = vmatprep.subr.mxu0 0.0
          %799 = vmatpush2.msra.mxu0 0.0
          %800 = vmatprep.subr.mxu0 0.0
          %801 = vmatpush2.msra.mxu0 0.0
          %802 = vmatprep.subr.mxu0 0.0
          %803 = vmatpush2.msra.mxu0 0.0
          %804 = vmatprep.subr.mxu0 0.0
          %805 = vmatpush2.msra.mxu0 0.0
          %806 = vmatprep.subr.mxu0 0.0
          %807 = vmatpush2.msra.mxu0 0.0
          %808 = vmatprep.subr.mxu0 0.0
          %809 = vmatpush2.msra.mxu0 0.0
          %810 = vmatprep.mubr.f32.mxu0 0.0
          %811 = vmatmul.mubr.f32.gmra.mxu0 %v741
          %v812 = vpop.f32.mrf.mxu0
          %v813 = vadd.f32 0.0, %v812
          %v814 = vpop.f32.mrf.mxu0
          %815 = vmatprep.mubr.f32.mxu0 0.0
          %816 = vmatmul.mubr.f32.gmra.mxu0 %v744
          %v817 = vpop.f32.mrf.mxu0
          %v818 = vadd.f32 0.0, %v817
          %v819 = vpop.f32.mrf.mxu0
          %820 = vdwg.mxu0
          %v821 = vadd.f32 %v738, %v813
          %v822 = vadd.f32 %v739, %v818
          %s823 = sld [smem:[#allocation3]]
          %v824 = vstv %s823
          %v825 = vadd.f32 %v821, %v824
          %v826 = vadd.f32 %v822, %v824
          %v827 = vxor.u32 %v825, 2147483648
          %v828 = vxor.u32 %v826, 2147483648
          %v829 = vmul.f32 %v827, 1.442695
          %v830 = vpow.pop %v829
          %v831 = vmul.f32 %v828, 1.442695
          %v832 = vpow.pop %v831
          %v833 = vadd.f32 %v830, 1.0
          %v834 = vadd.f32 %v832, 1.0
          %v835 = vrcp.pop %v833
          %v836 = vmul.f32 1.0, %v835
          %v837 = vrcp.pop %v834
          %v838 = vmul.f32 1.0, %v837
          %v839 = vld [vmem:[%s3] sm:$0xf]
          %v840 = vld [vmem:[%s3 + $0x4] sm:$0xf]
          %v841 = vld [vmem:[%s3 + $0x8] sm:$0xf]
          %v842 = vld [vmem:[%s3 + $0xc] sm:$0xf]
          %v843 = vpack.c.bf16 %v838, %v836
          %v848 = vunpack.c.l.b16 %v839
          %v849 = vunpack.c.l.b16 %v840
          %v850 = vunpack.c.l.b16 %v841
          %v851 = vunpack.c.l.b16 %v842
          %v852 = vpack.c.b16 %v849, %v848
          %v853 = vpack.c.b16 %v851, %v850
          %v855 = vsel %vm656, %v852, 0
          %v858 = vsel %vm656, %v853, 0
          %860 = vmatprep.subr.bf16.mxu0 0
          %861 = vmatpush1.bf16.msra.mxu0 0
          %862 = vmatprep.subr.bf16.mxu0 0
          %863 = vmatpush1.bf16.msra.mxu0 0
          %864 = vmatprep.subr.bf16.mxu0 0
          %865 = vmatpush1.bf16.msra.mxu0 0
          %866 = vmatprep.subr.bf16.mxu0 0
          %867 = vmatpush1.bf16.msra.mxu0 0
          %868 = vmatprep.subr.bf16.mxu0 0
          %869 = vmatpush1.bf16.msra.mxu0 0
          %870 = vmatprep.subr.bf16.mxu0 0
          %871 = vmatpush1.bf16.msra.mxu0 0
          %872 = vmatprep.subr.bf16.mxu0 0
          %873 = vmatpush1.bf16.msra.mxu0 0
          %874 = vmatprep.subr.bf16.mxu0 0
          %875 = vmatpush1.bf16.msra.mxu0 %v843
          %876 = vmatprep.subr.bf16.mxu0 0
          %877 = vmatpush2.bf16.msra.mxu0 0
          %878 = vmatprep.subr.bf16.mxu0 0
          %879 = vmatpush2.bf16.msra.mxu0 0
          %880 = vmatprep.subr.bf16.mxu0 0
          %881 = vmatpush2.bf16.msra.mxu0 0
          %882 = vmatprep.subr.bf16.mxu0 0
          %883 = vmatpush2.bf16.msra.mxu0 0
          %884 = vmatprep.subr.bf16.mxu0 0
          %885 = vmatpush2.bf16.msra.mxu0 0
          %886 = vmatprep.subr.bf16.mxu0 0
          %887 = vmatpush2.bf16.msra.mxu0 0
          %888 = vmatprep.subr.bf16.mxu0 0
          %889 = vmatpush2.bf16.msra.mxu0 0
          %890 = vmatprep.subr.bf16.mxu0 0
          %891 = vmatpush2.bf16.msra.mxu0 0
          %892 = vmatprep.mubr.bf16.mxu0 0
          %893 = vmatmul.mubr.bf16.gmra.mxu0 %v855
          %v894 = vpop.f32.mrf.mxu0
          %v895 = vadd.f32 0.0, %v894
          %v896 = vpop.f32.mrf.mxu0
          %v897 = vpop.f32.mrf.mxu0
          %v898 = vadd.f32 0.0, %v897
          %v899 = vpop.f32.mrf.mxu0
          %900 = vmatprep.mubr.bf16.mxu0 0
          %901 = vmatmul.mubr.bf16.gmra.mxu0 %v858
          %v902 = vpop.f32.mrf.mxu0
          %v903 = vadd.f32 0.0, %v902
          %v904 = vpop.f32.mrf.mxu0
          %v905 = vpop.f32.mrf.mxu0
          %v906 = vadd.f32 0.0, %v905
          %v907 = vpop.f32.mrf.mxu0
          %908 = vdwg.mxu0
          %v909 = vpack.c.bf16 %v898, %v895
          %v910 = vpack.c.bf16 %v906, %v903
          %v911 = vld [vmem:[%s4] sm:$0xf]
          %v912 = vld [vmem:[%s4 + $0x4] sm:$0xf]
          %v915 = vunpack.c.l.b16 %v911
          %v916 = vunpack.c.l.b16 %v912
          %v917 = vpack.c.b16 %v916, %v915
          %v920 = vsel %vm656, %v909, 0
          %v923 = vsel %vm656, %v910, 0
          %925 = vmatprep.subr.bf16.mxu0 0
          %926 = vmatpush1.bf16.msra.mxu0 0
          %927 = vmatprep.subr.bf16.mxu0 0
          %928 = vmatpush1.bf16.msra.mxu0 0
          %929 = vmatprep.subr.bf16.mxu0 0
          %930 = vmatpush1.bf16.msra.mxu0 0
          %931 = vmatprep.subr.bf16.mxu0 0
          %932 = vmatpush1.bf16.msra.mxu0 0
          %933 = vmatprep.subr.bf16.mxu0 0
          %934 = vmatpush1.bf16.msra.mxu0 0
          %935 = vmatprep.subr.bf16.mxu0 0
          %936 = vmatpush1.bf16.msra.mxu0 0
          %937 = vmatprep.subr.bf16.mxu0 0
          %938 = vmatpush1.bf16.msra.mxu0 0
          %939 = vmatprep.subr.bf16.mxu0 0
          %940 = vmatpush1.bf16.msra.mxu0 %v917
          %941 = vmatprep.subr.bf16.mxu0 0
          %942 = vmatpush2.bf16.msra.mxu0 0
          %943 = vmatprep.subr.bf16.mxu0 0
          %944 = vmatpush2.bf16.msra.mxu0 0
          %945 = vmatprep.subr.bf16.mxu0 0
          %946 = vmatpush2.bf16.msra.mxu0 0
          %947 = vmatprep.subr.bf16.mxu0 0
          %948 = vmatpush2.bf16.msra.mxu0 0
          %949 = vmatprep.subr.bf16.mxu0 0
          %950 = vmatpush2.bf16.msra.mxu0 0
          %951 = vmatprep.subr.bf16.mxu0 0
          %952 = vmatpush2.bf16.msra.mxu0 0
          %953 = vmatprep.subr.bf16.mxu0 0
          %954 = vmatpush2.bf16.msra.mxu0 0
          %955 = vmatprep.subr.bf16.mxu0 0
          %956 = vmatpush2.bf16.msra.mxu0 0
          %957 = vmatprep.mubr.bf16.mxu0 0
          %958 = vmatmul.mubr.bf16.gmra.mxu0 %v920
          %v959 = vpop.f32.mrf.mxu0
          %v960 = vadd.f32 0.0, %v959
          %v961 = vpop.f32.mrf.mxu0
          %v962 = vpop.f32.mrf.mxu0
          %v963 = vadd.f32 0.0, %v962
          %v964 = vpop.f32.mrf.mxu0
          %965 = vmatprep.mubr.bf16.mxu0 0
          %966 = vmatmul.mubr.bf16.gmra.mxu0 %v923
          %v967 = vpop.f32.mrf.mxu0
          %v968 = vadd.f32 0.0, %v967
          %v969 = vpop.f32.mrf.mxu0
          %v970 = vpop.f32.mrf.mxu0
          %v971 = vadd.f32 0.0, %v970
          %v972 = vpop.f32.mrf.mxu0
          %973 = vdwg.mxu0
          %vm974 = vcmask 261120
          %975 = vst.msk [vmem:[%s274] sm:$0xff] %vm974, %v960
          %976 = vst.msk [vmem:[%s274 + $0x8] sm:$0xff] %vm974, %v963
          %977 = vst.msk [vmem:[%s274 + $0x10] sm:$0xff] %vm974, %v968
          %978 = vst.msk [vmem:[%s274 + $0x18] sm:$0xff] %vm974, %v971
        $region60: #{tpu_custom_call.1} parent=39 // pred_fallthru
          _
        %s979 = sand.u32 %s156, 1
        %s980 = scalar_lea.sflag [#allocation6], %s979
        %s981 = sand.u32 %s156, 1
        %s982 = smul.addr %s981, 32
        %s983 = scalar_lea.vmem [#allocation9], %s982
        // Predicated region
        $region61: #{tpu_custom_call.1} parent=39 // pred_check
          %p984 = pneg %p166
        $region62: #{tpu_custom_call.1} parent=39 // pred_check_branch
          %986 = sbr.rel (%p984) target = $region64
        $region63: #{tpu_custom_call.1} parent=39 // pred_region
          %s988 = ssub.s32 512, 512
          %989 = vsyncadd %s980, %s988
          %s990 = smul.addr %s28, 4
          %s991 = smul.addr %s990, 128
          %s992 = scalar_lea.hbm %s5, %s991
          %s993 = sshll.u32 %s983, 4
          %s994 = int_to_ptr.vmem [resolvable:$true] %s993
          %999 = dma.vmem_to_hbm [thread:$0]  %s994, 512, %s992, %s980, 128, 128, 8
        $region64: #{tpu_custom_call.1} parent=39 // pred_fallthru
          _
      $region40: #{tpu_custom_call.1} parent=5 // pred_fallthru
        _
      %p1000 = scmp.le.s32.totalorder 2, %s19
      // Predicated region
      $region65: #{tpu_custom_call.1} parent=5 // pred_check
        %p1001 = pneg %p1000
      $region66: #{tpu_custom_call.1} parent=5 // pred_check_branch
        %1003 = sbr.rel (%p1001) target = $region68
      $region67: #{tpu_custom_call.1} parent=5 // pred_region
        %s1004 = ssub.s32 %s19, 2
        // Predicated region
        $region69: #{tpu_custom_call.1} parent=67 // pred_check
          %p1005 = pneg %p172
        $region70: #{tpu_custom_call.1} parent=67 // pred_check_branch
          %1007 = sbr.rel (%p1005) target = $region72
        $region71: #{tpu_custom_call.1} parent=67 // pred_region
          %s1008 = sand.u32 %s157, 1
          %s1009 = scalar_lea.sflag [#allocation6], %s1008
          %s1010 = sand.u32 %s157, 1
          %s1011 = smul.addr %s1010, 32
          %s1012 = scalar_lea.vmem [#allocation9], %s1011
          %1013 = dma.done %s1009, 512
        $region72: #{tpu_custom_call.1} parent=67 // pred_fallthru
          _
      $region68: #{tpu_custom_call.1} parent=5 // pred_fallthru
        _
    $region6: #{tpu_custom_call.1} parent=1 // loop_footer
      %s23 = sadd.s32 1, %s19
    $region7: #{tpu_custom_call.1} parent=1 // loop_footer_branch
      %18 = sbr.rel target = $region3
    $region8: #{tpu_custom_call.1} parent=1 // loop_exit
      _
    %1014 = vsyncpa [#allocation5], 1
    %s1015 = scalar_lea.sflag [#allocation5], 1
    %1016 = vsyncpa %s1015, 1
    %1017 = vsyncpa [#allocation6], 1
    %s1018 = scalar_lea.sflag [#allocation6], 1
    %1019 = vsyncpa %s1018, 1
    %1020 = vsyncpa [#allocation7], 1
    %s1021 = scalar_lea.sflag [#allocation7], 1
    %1022 = vsyncpa %s1021, 1

</llo_original>
